<compile_context>
chip_gen: v5e
topology: v5e:2x2
jax: 0.10.0
libtpu: 0.0.40
codegen_flags: <defaults>
</compile_context>

<pallas_src>
import numpy as np
import jax
import jax.numpy as jnp
from jax.experimental import pallas as pl
from jax.experimental.pallas import tpu as pltpu

# These attributes are referenced but not defined in the reference __init__;
# use the standard holography-library defaults so the padded size is 2H x 2W
# (matches the forward's output slice [..., H:, W:]).
DO_PADDING = True
DEFAULT_PADDING_SCALE = (1.0, 1.0)


def compute_padding(H, W):
    if not DO_PADDING:
        return int(H), int(W)
    pad_h = int(np.floor(DEFAULT_PADDING_SCALE[0] * H / 2))
    pad_w = int(np.floor(DEFAULT_PADDING_SCALE[1] * W / 2))
    return H + 2 * pad_h, W + 2 * pad_w


def _dft_mats(n, sign):
    """Real/imag parts of the (symmetric) DFT matrix exp(sign*2*pi*i*u*v/n)."""
    idx = np.arange(n)
    ang = sign * 2.0 * np.pi * np.outer(idx, idx) / n
    return np.cos(ang), np.sin(ang)


def _choose_cblk(C, PW):
    """Smallest divisor of C giving >=128 packed lanes (else largest <=512)."""
    best = 1
    for d in range(1, C + 1):
        if C % d == 0 and d * PW <= 512:
            best = d
            if d * PW >= 128:
                break
    return best


def _rs_fft_kernel(kv_ref, ur_ref, ui_ref, r_ref, facr_ref, amp_ref,
                   fhu_r, fhu_i, fwu_r, fwu_i,
                   fhk_r, fhk_i, fwk_r, fwk_i,
                   gh_r, gh_i, gw_r, gw_i,
                   or_ref, oi_ref):
    # --- Rayleigh-Sommerfeld kernel for this channel block (VPU/EUP) ---------
    kv = kv_ref[...]                      # (1, Cb*PW): k = 2*pi/lambda per lane
    r = r_ref[...]                        # (PH, Cb*PW): tiled radial distance
    kr = kv * r
    cs = jnp.cos(kr)
    sn = jnp.sin(kr)
    fac_r = facr_ref[...]                 # z / (2*pi*r^3)
    fac_i = -amp_ref[...] * kv            # -(z / (2*pi*r^2)) * k
    K_r = cs * fac_r - sn * fac_i         # exp(i*k*r) * factor
    K_i = cs * fac_i + sn * fac_r

    def cmm(ar, ai, br, bi):
        # 3-multiply (Gauss) complex matmul with f32 accumulation on the MXU.
        t1 = jnp.dot(ar, br, preferred_element_type=jnp.float32)
        t2 = jnp.dot(ai, bi, preferred_element_type=jnp.float32)
        t3 = jnp.dot(ar + ai, br + bi, preferred_element_type=jnp.float32)
        return t1 - t2, t3 - t1 - t2

    # fft2(K): shared left DFT, block-diagonal per-channel right DFT.
    tr, ti = cmm(fhk_r[...], fhk_i[...], K_r, K_i)
    fkr, fki = cmm(tr, ti, fwk_r[...], fwk_i[...])

    # fft2(U): zero padding exploited via pre-sliced DFT matrices.
    tr, ti = cmm(fhu_r[...], fhu_i[...], ur_ref[...], ui_ref[...])
    fur, fui = cmm(tr, ti, fwu_r[...], fwu_i[...])

    # spectrum product (dx*dy and 1/(PH*PW) are folded into gh_* host-side)
    sr = fur * fkr - fui * fki
    si = fur * fki + fui * fkr

    # cropped inverse DFT -> direct lane-dense store of (Hout, Cb*Wout)
    tr, ti = cmm(gh_r[...], gh_i[...], sr, si)
    orr, ori = cmm(tr, ti, gw_r[...], gw_i[...])
    or_ref[...] = orr
    oi_ref[...] = ori


def fraunhofer_prop(field_data, wavelengths, dx, dy, z):
    """field_data: complex64 (B=1, C, H, W); wavelengths: (C,) float32."""
    B, C, H, W = field_data.shape
    assert B == 1, "reference forward only supports batch size 1 (U has batch 1)"
    PH, PW = compute_padding(H, W)
    Hout, Wout = PH - H, PW - W

    Cb = _choose_cblk(C, PW)              # channels packed along lanes per step
    nb = C // Cb                          # grid length
    NL = Cb * PW                          # packed lane width

    # ---- host-side (trace-time) constants -----------------------------------
    x = np.linspace(-PH * dx / 2, PH * dx / 2, PH)
    y = np.linspace(-PW * dx / 2, PW * dx / 2, PW)   # note: dx, as in the reference
    mx, my = np.meshgrid(x, y, indexing="ij")
    r = np.sqrt(mx * mx + my * my + z * z)
    amp = z / (2.0 * np.pi) / (r * r)                # z / (2*pi*r^2)
    facr = amp / r                                   # z / (2*pi*r^3)

    r_t = jnp.asarray(np.tile(r, (1, Cb)), jnp.float32)
    facr_t = jnp.asarray(np.tile(facr, (1, Cb)), jnp.float32)
    amp_t = jnp.asarray(np.tile(amp, (1, Cb)), jnp.float32)

    FHr, FHi = _dft_mats(PH, -1.0)
    FWr, FWi = _dft_mats(PW, -1.0)
    GHr, GHi = _dft_mats(PH, +1.0)
    GWr, GWi = _dft_mats(PW, +1.0)

    eye = np.eye(Cb)
    bd = lambda m: np.kron(eye, m)        # block-diagonal repeat across channels
    f32 = lambda a: jnp.asarray(a, jnp.float32)

    # forward DFTs, pre-sliced to exploit U's zero padding
    fhu_r, fhu_i = f32(FHr[:, :H]), f32(FHi[:, :H])            # (PH, H)
    fwu_r, fwu_i = f32(bd(FWr[:W, :])), f32(bd(FWi[:W, :]))    # (Cb*W, Cb*PW)
    # forward DFTs for the RS kernel (full size)
    fhk_r, fhk_i = f32(FHr), f32(FHi)                          # (PH, PH)
    fwk_r, fwk_i = f32(bd(FWr)), f32(bd(FWi))                  # (Cb*PW, Cb*PW)
    # inverse DFTs, pre-sliced to the output crop; dx*dy/(PH*PW) folded in
    sc = dx * dy / (PH * PW)
    gh_r, gh_i = f32(GHr[H:, :] * sc), f32(GHi[H:, :] * sc)    # (Hout, PH)
    gw_r, gw_i = f32(bd(GWr[:, W:])), f32(bd(GWi[:, W:]))      # (Cb*PW, Cb*Wout)

    # ---- per-channel-block inputs (channels packed along lanes) -------------
    fd = field_data[0]
    pack = lambda a: a.reshape(nb, Cb, H, W).transpose(0, 2, 1, 3).reshape(nb, H, Cb * W)
    ur = pack(jnp.real(fd).astype(jnp.float32))
    ui = pack(jnp.imag(fd).astype(jnp.float32))

    kvals = (2.0 * np.pi) / wavelengths.astype(jnp.float32)          # (C,)
    k_row = jnp.repeat(kvals.reshape(nb, Cb), PW, axis=1).reshape(nb, 1, NL)

    # ---- BlockSpecs ----------------------------------------------------------
    def invariant(arr):                   # grid-invariant operand, full block
        nd = arr.ndim
        return pl.BlockSpec(arr.shape, lambda b: (0,) * nd)

    def per_block(arr):                   # one channel-block per grid step
        nd = arr.ndim
        return pl.BlockSpec((None,) + arr.shape[1:],
                            lambda b: (b,) + (0,) * (nd - 1))

    inputs = (k_row, ur, ui, r_t, facr_t, amp_t,
              fhu_r, fhu_i, fwu_r, fwu_i,
              fhk_r, fhk_i, fwk_r, fwk_i,
              gh_r, gh_i, gw_r, gw_i)
    in_specs = [per_block(k_row), per_block(ur), per_block(ui),
                invariant(r_t), invariant(facr_t), invariant(amp_t),
                invariant(fhu_r), invariant(fhu_i), invariant(fwu_r), invariant(fwu_i),
                invariant(fhk_r), invariant(fhk_i), invariant(fwk_r), invariant(fwk_i),
                invariant(gh_r), invariant(gh_i), invariant(gw_r), invariant(gw_i)]

    out_sds = jax.ShapeDtypeStruct((nb, Hout, Cb * Wout), jnp.float32)
    out_spec = pl.BlockSpec((None, Hout, Cb * Wout), lambda b: (b, 0, 0))

    out_r, out_i = pl.pallas_call(
        _rs_fft_kernel,
        out_shape=(out_sds, out_sds),
        grid=(nb,),
        in_specs=in_specs,
        out_specs=(out_spec, out_spec),
        compiler_params=pltpu.CompilerParams(
            dimension_semantics=("parallel",),
            # For large PH also set vmem_limit_bytes and single-buffer the
            # invariant DFT inputs (pipeline_mode=pl.Buffered(1)); unnecessary
            # at this size.
        ),
    )(*inputs)

    out = (out_r + 1j * out_i).astype(jnp.complex64)        # (nb, Hout, Cb*Wout)
    out = out.reshape(nb, Hout, Cb, Wout).transpose(0, 2, 1, 3).reshape(C, Hout, Wout)
    return out[None, ...]


def reference_forward(field_data, wavelengths, dx, dy, z):
    """Plain-JAX transcription of the PyTorch forward (fft2-based)."""
    B, C, H, W = field_data.shape
    PH, PW = compute_padding(H, W)
    x = jnp.linspace(-PH * dx / 2, PH * dx / 2, PH, dtype=jnp.float32)
    y = jnp.linspace(-PW * dx / 2, PW * dx / 2, PW, dtype=jnp.float32)
    meshx, meshy = jnp.meshgrid(x, y, indexing="ij")
    k = 2 * jnp.pi / wavelengths[:, None, None]
    r = jnp.sqrt(meshx ** 2 + meshy ** 2 + z ** 2)
    factor = 1 / (2 * jnp.pi) * z / r ** 2 * (1 / r - 1j * k)
    kern = (jnp.exp(1j * k * r) * factor)[None, ...]
    U = jnp.zeros_like(kern)
    U = U.at[..., :H, :W].set(field_data)
    spec = jnp.fft.fft2(U) * jnp.fft.fft2(kern) * dx * dy
    return jnp.fft.ifft2(spec)[..., H:, W:]


if __name__ == "__main__":
    key = jax.random.PRNGKey(0)
    B, C, H, W = 1, 4, 16, 16          # batch must be 1 (see reference forward)
    k1, k2 = jax.random.split(key, 2)
    field_data = (jax.random.normal(k1, (B, C, H, W), jnp.float32)
                  + 1j * jax.random.normal(k2, (B, C, H, W), jnp.float32)
                  ).astype(jnp.complex64)
    wavelengths = jnp.linspace(0.4, 0.7, C, dtype=jnp.float32)
    dx = dy = 0.5
    z = 2.0

    out = fraunhofer_prop(field_data, wavelengths, dx, dy, z)
    out = jax.block_until_ready(out)

    ref = reference_forward(field_data, wavelengths, dx, dy, z)
    err = float(jnp.max(jnp.abs(out - ref)))
    scale = float(jnp.max(jnp.abs(ref)))
    assert out.shape == (B, C, H, W)
    assert err <= 5e-3 * scale + 1e-5, (err, scale)
    print("KERNEL_OK")
</pallas_src>

<mosaic_0001>
module attributes {stable_mosaic.version = 11 : i64} {
  func.func @_rs_fft_kernel(%arg0: i32, %arg1: memref<1x1x128xf32, #tpu.memory_space<vmem>>, %arg2: memref<1x16x64xf32, #tpu.memory_space<vmem>>, %arg3: memref<1x16x64xf32, #tpu.memory_space<vmem>>, %arg4: memref<32x128xf32, #tpu.memory_space<vmem>>, %arg5: memref<32x128xf32, #tpu.memory_space<vmem>>, %arg6: memref<32x128xf32, #tpu.memory_space<vmem>>, %arg7: memref<32x16xf32, #tpu.memory_space<vmem>>, %arg8: memref<32x16xf32, #tpu.memory_space<vmem>>, %arg9: memref<64x128xf32, #tpu.memory_space<vmem>>, %arg10: memref<64x128xf32, #tpu.memory_space<vmem>>, %arg11: memref<32x32xf32, #tpu.memory_space<vmem>>, %arg12: memref<32x32xf32, #tpu.memory_space<vmem>>, %arg13: memref<128x128xf32, #tpu.memory_space<vmem>>, %arg14: memref<128x128xf32, #tpu.memory_space<vmem>>, %arg15: memref<16x32xf32, #tpu.memory_space<vmem>>, %arg16: memref<16x32xf32, #tpu.memory_space<vmem>>, %arg17: memref<128x64xf32, #tpu.memory_space<vmem>>, %arg18: memref<128x64xf32, #tpu.memory_space<vmem>>, %arg19: memref<1x16x64xf32, #tpu.memory_space<vmem>>, %arg20: memref<1x16x64xf32, #tpu.memory_space<vmem>>) attributes {dimension_semantics = [#tpu.dimension_semantics<parallel>], iteration_bounds = array<i64: 1>, scalar_prefetch = 0 : i64, scratch_operands = 0 : i64, tpu.core_type = #tpu.core_type<tc>, window_params = [{transform_indices = @transform_0, window_bounds = array<i64: 1, 1, 128>}, {transform_indices = @transform_1, window_bounds = array<i64: 1, 16, 64>}, {transform_indices = @transform_2, window_bounds = array<i64: 1, 16, 64>}, {pipeline_mode = #tpu.pipeline_mode<synchronous>, transform_indices = @transform_3, window_bounds = array<i64: 32, 128>}, {pipeline_mode = #tpu.pipeline_mode<synchronous>, transform_indices = @transform_4, window_bounds = array<i64: 32, 128>}, {pipeline_mode = #tpu.pipeline_mode<synchronous>, transform_indices = @transform_5, window_bounds = array<i64: 32, 128>}, {pipeline_mode = #tpu.pipeline_mode<synchronous>, transform_indices = @transform_6, window_bounds = array<i64: 32, 16>}, {pipeline_mode = #tpu.pipeline_mode<synchronous>, transform_indices = @transform_7, window_bounds = array<i64: 32, 16>}, {pipeline_mode = #tpu.pipeline_mode<synchronous>, transform_indices = @transform_8, window_bounds = array<i64: 64, 128>}, {pipeline_mode = #tpu.pipeline_mode<synchronous>, transform_indices = @transform_9, window_bounds = array<i64: 64, 128>}, {pipeline_mode = #tpu.pipeline_mode<synchronous>, transform_indices = @transform_10, window_bounds = array<i64: 32, 32>}, {pipeline_mode = #tpu.pipeline_mode<synchronous>, transform_indices = @transform_11, window_bounds = array<i64: 32, 32>}, {pipeline_mode = #tpu.pipeline_mode<synchronous>, transform_indices = @transform_12, window_bounds = array<i64: 128, 128>}, {pipeline_mode = #tpu.pipeline_mode<synchronous>, transform_indices = @transform_13, window_bounds = array<i64: 128, 128>}, {pipeline_mode = #tpu.pipeline_mode<synchronous>, transform_indices = @transform_14, window_bounds = array<i64: 16, 32>}, {pipeline_mode = #tpu.pipeline_mode<synchronous>, transform_indices = @transform_15, window_bounds = array<i64: 16, 32>}, {pipeline_mode = #tpu.pipeline_mode<synchronous>, transform_indices = @transform_16, window_bounds = array<i64: 128, 64>}, {pipeline_mode = #tpu.pipeline_mode<synchronous>, transform_indices = @transform_17, window_bounds = array<i64: 128, 64>}, {transform_indices = @transform_18, window_bounds = array<i64: 1, 16, 64>}, {transform_indices = @transform_19, window_bounds = array<i64: 1, 16, 64>}]} {
    %c0 = arith.constant 0 : index
    %c0_0 = arith.constant 0 : index
    %c0_1 = arith.constant 0 : index
    %0 = vector.load %arg1[%c0, %c0_0, %c0_1] : memref<1x1x128xf32, #tpu.memory_space<vmem>>, vector<1x1x128xf32>
    %1 = vector.shape_cast %0 : vector<1x1x128xf32> to vector<1x128xf32>
    %c0_2 = arith.constant 0 : index
    %c0_3 = arith.constant 0 : index
    %2 = vector.load %arg4[%c0_2, %c0_3] : memref<32x128xf32, #tpu.memory_space<vmem>>, vector<32x128xf32>
    %3 = vector.broadcast %1 : vector<1x128xf32> to vector<32x128xf32>
    %4 = arith.mulf %3, %2 : vector<32x128xf32>
    %5 = math.cos %4 : vector<32x128xf32>
    %6 = math.sin %4 : vector<32x128xf32>
    %c0_4 = arith.constant 0 : index
    %c0_5 = arith.constant 0 : index
    %7 = vector.load %arg5[%c0_4, %c0_5] : memref<32x128xf32, #tpu.memory_space<vmem>>, vector<32x128xf32>
    %c0_6 = arith.constant 0 : index
    %c0_7 = arith.constant 0 : index
    %8 = vector.load %arg6[%c0_6, %c0_7] : memref<32x128xf32, #tpu.memory_space<vmem>>, vector<32x128xf32>
    %cst = arith.constant 0.000000e+00 : f32
    %9 = vector.broadcast %cst : f32 to vector<32x128xf32>
    %10 = arith.subf %9, %8 : vector<32x128xf32>
    %11 = vector.broadcast %1 : vector<1x128xf32> to vector<32x128xf32>
    %12 = arith.mulf %10, %11 : vector<32x128xf32>
    %13 = arith.mulf %5, %7 : vector<32x128xf32>
    %14 = arith.mulf %6, %12 : vector<32x128xf32>
    %15 = arith.subf %13, %14 : vector<32x128xf32>
    %16 = arith.mulf %5, %12 : vector<32x128xf32>
    %17 = arith.mulf %6, %7 : vector<32x128xf32>
    %18 = arith.addf %16, %17 : vector<32x128xf32>
    %c0_8 = arith.constant 0 : index
    %c0_9 = arith.constant 0 : index
    %19 = vector.load %arg11[%c0_8, %c0_9] : memref<32x32xf32, #tpu.memory_space<vmem>>, vector<32x32xf32>
    %c0_10 = arith.constant 0 : index
    %c0_11 = arith.constant 0 : index
    %20 = vector.load %arg12[%c0_10, %c0_11] : memref<32x32xf32, #tpu.memory_space<vmem>>, vector<32x32xf32>
    %cst_12 = arith.constant dense<0.000000e+00> : vector<32x128xf32>
    %21 = tpu.matmul %19, %15, %cst_12 {dimension_numbers = #tpu.dot_dimension_numbers<[1], [0], [0], [1], [0, 0, 1, 1], [], []>} : vector<32x32xf32>, vector<32x128xf32>, vector<32x128xf32> -> vector<32x128xf32>
    %cst_13 = arith.constant dense<0.000000e+00> : vector<32x128xf32>
    %22 = tpu.matmul %20, %18, %cst_13 {dimension_numbers = #tpu.dot_dimension_numbers<[1], [0], [0], [1], [0, 0, 1, 1], [], []>} : vector<32x32xf32>, vector<32x128xf32>, vector<32x128xf32> -> vector<32x128xf32>
    %23 = arith.addf %19, %20 : vector<32x32xf32>
    %24 = arith.addf %15, %18 : vector<32x128xf32>
    %cst_14 = arith.constant dense<0.000000e+00> : vector<32x128xf32>
    %25 = tpu.matmul %23, %24, %cst_14 {dimension_numbers = #tpu.dot_dimension_numbers<[1], [0], [0], [1], [0, 0, 1, 1], [], []>} : vector<32x32xf32>, vector<32x128xf32>, vector<32x128xf32> -> vector<32x128xf32>
    %26 = arith.subf %21, %22 : vector<32x128xf32>
    %27 = arith.subf %25, %21 : vector<32x128xf32>
    %28 = arith.subf %27, %22 : vector<32x128xf32>
    %c0_15 = arith.constant 0 : index
    %c0_16 = arith.constant 0 : index
    %29 = vector.load %arg13[%c0_15, %c0_16] : memref<128x128xf32, #tpu.memory_space<vmem>>, vector<128x128xf32>
    %c0_17 = arith.constant 0 : index
    %c0_18 = arith.constant 0 : index
    %30 = vector.load %arg14[%c0_17, %c0_18] : memref<128x128xf32, #tpu.memory_space<vmem>>, vector<128x128xf32>
    %cst_19 = arith.constant dense<0.000000e+00> : vector<32x128xf32>
    %31 = tpu.matmul %26, %29, %cst_19 {dimension_numbers = #tpu.dot_dimension_numbers<[1], [0], [0], [1], [0, 0, 1, 1], [], []>} : vector<32x128xf32>, vector<128x128xf32>, vector<32x128xf32> -> vector<32x128xf32>
    %cst_20 = arith.constant dense<0.000000e+00> : vector<32x128xf32>
    %32 = tpu.matmul %28, %30, %cst_20 {dimension_numbers = #tpu.dot_dimension_numbers<[1], [0], [0], [1], [0, 0, 1, 1], [], []>} : vector<32x128xf32>, vector<128x128xf32>, vector<32x128xf32> -> vector<32x128xf32>
    %33 = arith.addf %26, %28 : vector<32x128xf32>
    %34 = arith.addf %29, %30 : vector<128x128xf32>
    %cst_21 = arith.constant dense<0.000000e+00> : vector<32x128xf32>
    %35 = tpu.matmul %33, %34, %cst_21 {dimension_numbers = #tpu.dot_dimension_numbers<[1], [0], [0], [1], [0, 0, 1, 1], [], []>} : vector<32x128xf32>, vector<128x128xf32>, vector<32x128xf32> -> vector<32x128xf32>
    %36 = arith.subf %31, %32 : vector<32x128xf32>
    %37 = arith.subf %35, %31 : vector<32x128xf32>
    %38 = arith.subf %37, %32 : vector<32x128xf32>
    %c0_22 = arith.constant 0 : index
    %c0_23 = arith.constant 0 : index
    %39 = vector.load %arg7[%c0_22, %c0_23] : memref<32x16xf32, #tpu.memory_space<vmem>>, vector<32x16xf32>
    %c0_24 = arith.constant 0 : index
    %c0_25 = arith.constant 0 : index
    %40 = vector.load %arg8[%c0_24, %c0_25] : memref<32x16xf32, #tpu.memory_space<vmem>>, vector<32x16xf32>
    %c0_26 = arith.constant 0 : index
    %c0_27 = arith.constant 0 : index
    %c0_28 = arith.constant 0 : index
    %41 = vector.load %arg2[%c0_26, %c0_27, %c0_28] : memref<1x16x64xf32, #tpu.memory_space<vmem>>, vector<1x16x64xf32>
    %42 = vector.shape_cast %41 : vector<1x16x64xf32> to vector<16x64xf32>
    %c0_29 = arith.constant 0 : index
    %c0_30 = arith.constant 0 : index
    %c0_31 = arith.constant 0 : index
    %43 = vector.load %arg3[%c0_29, %c0_30, %c0_31] : memref<1x16x64xf32, #tpu.memory_space<vmem>>, vector<1x16x64xf32>
    %44 = vector.shape_cast %43 : vector<1x16x64xf32> to vector<16x64xf32>
    %cst_32 = arith.constant dense<0.000000e+00> : vector<32x64xf32>
    %45 = tpu.matmul %39, %42, %cst_32 {dimension_numbers = #tpu.dot_dimension_numbers<[1], [0], [0], [1], [0, 0, 1, 1], [], []>} : vector<32x16xf32>, vector<16x64xf32>, vector<32x64xf32> -> vector<32x64xf32>
    %cst_33 = arith.constant dense<0.000000e+00> : vector<32x64xf32>
    %46 = tpu.matmul %40, %44, %cst_33 {dimension_numbers = #tpu.dot_dimension_numbers<[1], [0], [0], [1], [0, 0, 1, 1], [], []>} : vector<32x16xf32>, vector<16x64xf32>, vector<32x64xf32> -> vector<32x64xf32>
    %47 = arith.addf %39, %40 : vector<32x16xf32>
    %48 = arith.addf %42, %44 : vector<16x64xf32>
    %cst_34 = arith.constant dense<0.000000e+00> : vector<32x64xf32>
    %49 = tpu.matmul %47, %48, %cst_34 {dimension_numbers = #tpu.dot_dimension_numbers<[1], [0], [0], [1], [0, 0, 1, 1], [], []>} : vector<32x16xf32>, vector<16x64xf32>, vector<32x64xf32> -> vector<32x64xf32>
    %50 = arith.subf %45, %46 : vector<32x64xf32>
    %51 = arith.subf %49, %45 : vector<32x64xf32>
    %52 = arith.subf %51, %46 : vector<32x64xf32>
    %c0_35 = arith.constant 0 : index
    %c0_36 = arith.constant 0 : index
    %53 = vector.load %arg9[%c0_35, %c0_36] : memref<64x128xf32, #tpu.memory_space<vmem>>, vector<64x128xf32>
    %c0_37 = arith.constant 0 : index
    %c0_38 = arith.constant 0 : index
    %54 = vector.load %arg10[%c0_37, %c0_38] : memref<64x128xf32, #tpu.memory_space<vmem>>, vector<64x128xf32>
    %cst_39 = arith.constant dense<0.000000e+00> : vector<32x128xf32>
    %55 = tpu.matmul %50, %53, %cst_39 {dimension_numbers = #tpu.dot_dimension_numbers<[1], [0], [0], [1], [0, 0, 1, 1], [], []>} : vector<32x64xf32>, vector<64x128xf32>, vector<32x128xf32> -> vector<32x128xf32>
    %cst_40 = arith.constant dense<0.000000e+00> : vector<32x128xf32>
    %56 = tpu.matmul %52, %54, %cst_40 {dimension_numbers = #tpu.dot_dimension_numbers<[1], [0], [0], [1], [0, 0, 1, 1], [], []>} : vector<32x64xf32>, vector<64x128xf32>, vector<32x128xf32> -> vector<32x128xf32>
    %57 = arith.addf %50, %52 : vector<32x64xf32>
    %58 = arith.addf %53, %54 : vector<64x128xf32>
    %cst_41 = arith.constant dense<0.000000e+00> : vector<32x128xf32>
    %59 = tpu.matmul %57, %58, %cst_41 {dimension_numbers = #tpu.dot_dimension_numbers<[1], [0], [0], [1], [0, 0, 1, 1], [], []>} : vector<32x64xf32>, vector<64x128xf32>, vector<32x128xf32> -> vector<32x128xf32>
    %60 = arith.subf %55, %56 : vector<32x128xf32>
    %61 = arith.subf %59, %55 : vector<32x128xf32>
    %62 = arith.subf %61, %56 : vector<32x128xf32>
    %63 = arith.mulf %60, %36 : vector<32x128xf32>
    %64 = arith.mulf %62, %38 : vector<32x128xf32>
    %65 = arith.subf %63, %64 : vector<32x128xf32>
    %66 = arith.mulf %60, %38 : vector<32x128xf32>
    %67 = arith.mulf %62, %36 : vector<32x128xf32>
    %68 = arith.addf %66, %67 : vector<32x128xf32>
    %c0_42 = arith.constant 0 : index
    %c0_43 = arith.constant 0 : index
    %69 = vector.load %arg15[%c0_42, %c0_43] : memref<16x32xf32, #tpu.memory_space<vmem>>, vector<16x32xf32>
    %c0_44 = arith.constant 0 : index
    %c0_45 = arith.constant 0 : index
    %70 = vector.load %arg16[%c0_44, %c0_45] : memref<16x32xf32, #tpu.memory_space<vmem>>, vector<16x32xf32>
    %cst_46 = arith.constant dense<0.000000e+00> : vector<16x128xf32>
    %71 = tpu.matmul %69, %65, %cst_46 {dimension_numbers = #tpu.dot_dimension_numbers<[1], [0], [0], [1], [0, 0, 1, 1], [], []>} : vector<16x32xf32>, vector<32x128xf32>, vector<16x128xf32> -> vector<16x128xf32>
    %cst_47 = arith.constant dense<0.000000e+00> : vector<16x128xf32>
    %72 = tpu.matmul %70, %68, %cst_47 {dimension_numbers = #tpu.dot_dimension_numbers<[1], [0], [0], [1], [0, 0, 1, 1], [], []>} : vector<16x32xf32>, vector<32x128xf32>, vector<16x128xf32> -> vector<16x128xf32>
    %73 = arith.addf %69, %70 : vector<16x32xf32>
    %74 = arith.addf %65, %68 : vector<32x128xf32>
    %cst_48 = arith.constant dense<0.000000e+00> : vector<16x128xf32>
    %75 = tpu.matmul %73, %74, %cst_48 {dimension_numbers = #tpu.dot_dimension_numbers<[1], [0], [0], [1], [0, 0, 1, 1], [], []>} : vector<16x32xf32>, vector<32x128xf32>, vector<16x128xf32> -> vector<16x128xf32>
    %76 = arith.subf %71, %72 : vector<16x128xf32>
    %77 = arith.subf %75, %71 : vector<16x128xf32>
    %78 = arith.subf %77, %72 : vector<16x128xf32>
    %c0_49 = arith.constant 0 : index
    %c0_50 = arith.constant 0 : index
    %79 = vector.load %arg17[%c0_49, %c0_50] : memref<128x64xf32, #tpu.memory_space<vmem>>, vector<128x64xf32>
    %c0_51 = arith.constant 0 : index
    %c0_52 = arith.constant 0 : index
    %80 = vector.load %arg18[%c0_51, %c0_52] : memref<128x64xf32, #tpu.memory_space<vmem>>, vector<128x64xf32>
    %cst_53 = arith.constant dense<0.000000e+00> : vector<16x64xf32>
    %81 = tpu.matmul %76, %79, %cst_53 {dimension_numbers = #tpu.dot_dimension_numbers<[1], [0], [0], [1], [0, 0, 1, 1], [], []>} : vector<16x128xf32>, vector<128x64xf32>, vector<16x64xf32> -> vector<16x64xf32>
    %cst_54 = arith.constant dense<0.000000e+00> : vector<16x64xf32>
    %82 = tpu.matmul %78, %80, %cst_54 {dimension_numbers = #tpu.dot_dimension_numbers<[1], [0], [0], [1], [0, 0, 1, 1], [], []>} : vector<16x128xf32>, vector<128x64xf32>, vector<16x64xf32> -> vector<16x64xf32>
    %83 = arith.addf %76, %78 : vector<16x128xf32>
    %84 = arith.addf %79, %80 : vector<128x64xf32>
    %cst_55 = arith.constant dense<0.000000e+00> : vector<16x64xf32>
    %85 = tpu.matmul %83, %84, %cst_55 {dimension_numbers = #tpu.dot_dimension_numbers<[1], [0], [0], [1], [0, 0, 1, 1], [], []>} : vector<16x128xf32>, vector<128x64xf32>, vector<16x64xf32> -> vector<16x64xf32>
    %86 = arith.subf %81, %82 : vector<16x64xf32>
    %87 = arith.subf %85, %81 : vector<16x64xf32>
    %88 = arith.subf %87, %82 : vector<16x64xf32>
    %c0_56 = arith.constant 0 : index
    %c0_57 = arith.constant 0 : index
    %c0_58 = arith.constant 0 : index
    %89 = vector.load %arg19[%c0_56, %c0_57, %c0_58] : memref<1x16x64xf32, #tpu.memory_space<vmem>>, vector<1x16x64xf32>
    %90 = vector.shape_cast %89 : vector<1x16x64xf32> to vector<16x64xf32>
    %91 = vector.shape_cast %86 : vector<16x64xf32> to vector<1x16x64xf32>
    tpu.vector_store %arg19[%c0_56, %c0_57, %c0_58], %91 {strides = array<i32>} : memref<1x16x64xf32, #tpu.memory_space<vmem>>, vector<1x16x64xf32>,
    %c0_59 = arith.constant 0 : index
    %c0_60 = arith.constant 0 : index
    %c0_61 = arith.constant 0 : index
    %92 = vector.load %arg20[%c0_59, %c0_60, %c0_61] : memref<1x16x64xf32, #tpu.memory_space<vmem>>, vector<1x16x64xf32>
    %93 = vector.shape_cast %92 : vector<1x16x64xf32> to vector<16x64xf32>
    %94 = vector.shape_cast %88 : vector<16x64xf32> to vector<1x16x64xf32>
    tpu.vector_store %arg20[%c0_59, %c0_60, %c0_61], %94 {strides = array<i32>} : memref<1x16x64xf32, #tpu.memory_space<vmem>>, vector<1x16x64xf32>,
    return
  }
  func.func @transform_0(%arg0: i32) -> (i32, i32, i32) {
    %c0_i32 = arith.constant 0 : i32
    %c0_i32_0 = arith.constant 0 : i32
    %c0_i32_1 = arith.constant 0 : i32
    return %arg0, %c0_i32, %c0_i32_0 : i32, i32, i32
  }
  func.func @transform_1(%arg0: i32) -> (i32, i32, i32) {
    %c0_i32 = arith.constant 0 : i32
    %c0_i32_0 = arith.constant 0 : i32
    %c0_i32_1 = arith.constant 0 : i32
    return %arg0, %c0_i32, %c0_i32_0 : i32, i32, i32
  }
  func.func @transform_2(%arg0: i32) -> (i32, i32, i32) {
    %c0_i32 = arith.constant 0 : i32
    %c0_i32_0 = arith.constant 0 : i32
    %c0_i32_1 = arith.constant 0 : i32
    return %arg0, %c0_i32, %c0_i32_0 : i32, i32, i32
  }
  func.func @transform_3(%arg0: i32) -> (i32, i32) {
    %c0_i32 = arith.constant 0 : i32
    %c0_i32_0 = arith.constant 0 : i32
    %c0_i32_1 = arith.constant 0 : i32
    return %c0_i32, %c0_i32_0 : i32, i32
  }
  func.func @transform_4(%arg0: i32) -> (i32, i32) {
    %c0_i32 = arith.constant 0 : i32
    %c0_i32_0 = arith.constant 0 : i32
    %c0_i32_1 = arith.constant 0 : i32
    return %c0_i32, %c0_i32_0 : i32, i32
  }
  func.func @transform_5(%arg0: i32) -> (i32, i32) {
    %c0_i32 = arith.constant 0 : i32
    %c0_i32_0 = arith.constant 0 : i32
    %c0_i32_1 = arith.constant 0 : i32
    return %c0_i32, %c0_i32_0 : i32, i32
  }
  func.func @transform_6(%arg0: i32) -> (i32, i32) {
    %c0_i32 = arith.constant 0 : i32
    %c0_i32_0 = arith.constant 0 : i32
    %c0_i32_1 = arith.constant 0 : i32
    return %c0_i32, %c0_i32_0 : i32, i32
  }
  func.func @transform_7(%arg0: i32) -> (i32, i32) {
    %c0_i32 = arith.constant 0 : i32
    %c0_i32_0 = arith.constant 0 : i32
    %c0_i32_1 = arith.constant 0 : i32
    return %c0_i32, %c0_i32_0 : i32, i32
  }
  func.func @transform_8(%arg0: i32) -> (i32, i32) {
    %c0_i32 = arith.constant 0 : i32
    %c0_i32_0 = arith.constant 0 : i32
    %c0_i32_1 = arith.constant 0 : i32
    return %c0_i32, %c0_i32_0 : i32, i32
  }
  func.func @transform_9(%arg0: i32) -> (i32, i32) {
    %c0_i32 = arith.constant 0 : i32
    %c0_i32_0 = arith.constant 0 : i32
    %c0_i32_1 = arith.constant 0 : i32
    return %c0_i32, %c0_i32_0 : i32, i32
  }
  func.func @transform_10(%arg0: i32) -> (i32, i32) {
    %c0_i32 = arith.constant 0 : i32
    %c0_i32_0 = arith.constant 0 : i32
    %c0_i32_1 = arith.constant 0 : i32
    return %c0_i32, %c0_i32_0 : i32, i32
  }
  func.func @transform_11(%arg0: i32) -> (i32, i32) {
    %c0_i32 = arith.constant 0 : i32
    %c0_i32_0 = arith.constant 0 : i32
    %c0_i32_1 = arith.constant 0 : i32
    return %c0_i32, %c0_i32_0 : i32, i32
  }
  func.func @transform_12(%arg0: i32) -> (i32, i32) {
    %c0_i32 = arith.constant 0 : i32
    %c0_i32_0 = arith.constant 0 : i32
    %c0_i32_1 = arith.constant 0 : i32
    return %c0_i32, %c0_i32_0 : i32, i32
  }
  func.func @transform_13(%arg0: i32) -> (i32, i32) {
    %c0_i32 = arith.constant 0 : i32
    %c0_i32_0 = arith.constant 0 : i32
    %c0_i32_1 = arith.constant 0 : i32
    return %c0_i32, %c0_i32_0 : i32, i32
  }
  func.func @transform_14(%arg0: i32) -> (i32, i32) {
    %c0_i32 = arith.constant 0 : i32
    %c0_i32_0 = arith.constant 0 : i32
    %c0_i32_1 = arith.constant 0 : i32
    return %c0_i32, %c0_i32_0 : i32, i32
  }
  func.func @transform_15(%arg0: i32) -> (i32, i32) {
    %c0_i32 = arith.constant 0 : i32
    %c0_i32_0 = arith.constant 0 : i32
    %c0_i32_1 = arith.constant 0 : i32
    return %c0_i32, %c0_i32_0 : i32, i32
  }
  func.func @transform_16(%arg0: i32) -> (i32, i32) {
    %c0_i32 = arith.constant 0 : i32
    %c0_i32_0 = arith.constant 0 : i32
    %c0_i32_1 = arith.constant 0 : i32
    return %c0_i32, %c0_i32_0 : i32, i32
  }
  func.func @transform_17(%arg0: i32) -> (i32, i32) {
    %c0_i32 = arith.constant 0 : i32
    %c0_i32_0 = arith.constant 0 : i32
    %c0_i32_1 = arith.constant 0 : i32
    return %c0_i32, %c0_i32_0 : i32, i32
  }
  func.func @transform_18(%arg0: i32) -> (i32, i32, i32) {
    %c0_i32 = arith.constant 0 : i32
    %c0_i32_0 = arith.constant 0 : i32
    %c0_i32_1 = arith.constant 0 : i32
    return %arg0, %c0_i32, %c0_i32_0 : i32, i32, i32
  }
  func.func @transform_19(%arg0: i32) -> (i32, i32, i32) {
    %c0_i32 = arith.constant 0 : i32
    %c0_i32_0 = arith.constant 0 : i32
    %c0_i32_1 = arith.constant 0 : i32
    return %arg0, %c0_i32, %c0_i32_0 : i32, i32, i32
  }
}

</mosaic_0001>

<llo_original>
// kernel: tpu_custom_call.1
$region0: #{tpu_custom_call.1}
  #allocation0 [shape = 'u32[]', space=smem, size = 0x4, offset = 0x4, fixed_abs, tag = 'smem constant byte address 0x4 - core index']
  #allocation1 [shape = 'u32[72,128]{1,0:T(1,128)}', space=vmem, size = 0x9000, scoped, tag = 'internal scratch']
  %s0 = inlined_call_operand.vmem [shape: f32[1,1,128], index: 0, kind: input, shape index: {}]
  %s1 = inlined_call_operand.hbm [shape: f32[1,16,64], index: 1, kind: input, shape index: {}]
  %s2 = inlined_call_operand.hbm [shape: f32[1,16,64], index: 2, kind: input, shape index: {}]
  %s3 = inlined_call_operand.vmem [shape: f32[32,128], index: 3, kind: input, shape index: {}]
  %s4 = inlined_call_operand.hbm [shape: f32[32,128], index: 4, kind: input, shape index: {}]
  %s5 = inlined_call_operand.hbm [shape: f32[32,128], index: 5, kind: input, shape index: {}]
  %s6 = inlined_call_operand.vmem [shape: f32[32,16], index: 6, kind: input, shape index: {}]
  %s7 = inlined_call_operand.vmem [shape: f32[32,16], index: 7, kind: input, shape index: {}]
  %s8 = inlined_call_operand.vmem [shape: f32[64,128], index: 8, kind: input, shape index: {}]
  %s9 = inlined_call_operand.hbm [shape: f32[64,128], index: 9, kind: input, shape index: {}]
  %s10 = inlined_call_operand.hbm [shape: f32[32,32], index: 10, kind: input, shape index: {}]
  %s11 = inlined_call_operand.hbm [shape: f32[32,32], index: 11, kind: input, shape index: {}]
  %s12 = inlined_call_operand.vmem [shape: f32[128,128], index: 12, kind: input, shape index: {}]
  %s13 = inlined_call_operand.vmem [shape: f32[128,128], index: 13, kind: input, shape index: {}]
  %s14 = inlined_call_operand.hbm [shape: f32[16,32], index: 14, kind: input, shape index: {}]
  %s15 = inlined_call_operand.hbm [shape: f32[16,32], index: 15, kind: input, shape index: {}]
  %s16 = inlined_call_operand.vmem [shape: f32[128,64], index: 16, kind: input, shape index: {}]
  %s17 = inlined_call_operand.vmem [shape: f32[128,64], index: 17, kind: input, shape index: {}]
  %s18 = inlined_call_operand.hbm [shape: f32[1,16,64], index: 18, kind: output, shape index: {0}]
  %s19 = inlined_call_operand.hbm [shape: f32[1,16,64], index: 19, kind: output, shape index: {1}]
  %20 = xla_tuple %s18, %s19
  %s21 = sld [smem:[#allocation0]]
  $region126: #{tpu_custom_call.1} parent=0
    _
  %s23 = ssub.s32 1, %s21
  %s24 = scalar_select 0, %s23, %s21
  $region1: #{tpu_custom_call.1} parent=0
    #allocation2 [shape = 'u8[8192]{0}', space=vmem, size = 0x2000, scoped, tag = 'input window, operand 1, single buffered']
    #allocation3 [shape = 's32[1]{0}', space=sflag, size = 0x4, scoped, tag = 'scoped memory for tpu_custom_call.1']
    #allocation4 [shape = 's32[1]{0}', space=sflag, size = 0x4, scoped, tag = 'scoped memory for tpu_custom_call.1']
    #allocation5 [shape = 'u8[8192]{0}', space=vmem, size = 0x2000, scoped, tag = 'input window, operand 2, single buffered']
    #allocation6 [shape = 's32[1]{0}', space=sflag, size = 0x4, scoped, tag = 'scoped memory for tpu_custom_call.1']
    #allocation7 [shape = 'u8[16384]{0}', space=vmem, size = 0x4000, scoped, tag = 'input window, operand 4, single buffered']
    #allocation8 [shape = 'u8[16384]{0}', space=vmem, size = 0x4000, scoped, tag = 'input window, operand 5, single buffered']
    #allocation9 [shape = 's32[1]{0}', space=sflag, size = 0x4, scoped, tag = 'scoped memory for tpu_custom_call.1']
    #allocation10 [shape = 'u8[32768]{0}', space=vmem, size = 0x8000, scoped, tag = 'input window, operand 9, single buffered']
    #allocation11 [shape = 'u8[16384]{0}', space=vmem, size = 0x4000, scoped, tag = 'input window, operand 10, single buffered']
    #allocation12 [shape = 's32[1]{0}', space=sflag, size = 0x4, scoped, tag = 'scoped memory for tpu_custom_call.1']
    #allocation13 [shape = 'u8[16384]{0}', space=vmem, size = 0x4000, scoped, tag = 'input window, operand 11, single buffered']
    #allocation14 [shape = 'u8[8192]{0}', space=vmem, size = 0x2000, scoped, tag = 'input window, operand 14, single buffered']
    #allocation15 [shape = 's32[1]{0}', space=sflag, size = 0x4, scoped, tag = 'scoped memory for tpu_custom_call.1']
    #allocation16 [shape = 'u8[8192]{0}', space=vmem, size = 0x2000, scoped, tag = 'input window, operand 15, single buffered']
    #allocation17 [shape = 'u8[8192]{0}', space=vmem, size = 0x2000, scoped, tag = 'output window, operand 0, single buffered']
    #allocation18 [shape = 'u8[8192]{0}', space=vmem, size = 0x2000, scoped, tag = 'output window, operand 1, single buffered']
    #allocation19 [shape = 's32[1]{0}', space=sflag, size = 0x4, scoped, tag = 'scoped memory for tpu_custom_call.1']
    %25 = vsyncpa [#allocation3], 0
    %26 = vsyncpa [#allocation6], 0
    %27 = vsyncpa [#allocation9], 0
    %28 = vsyncpa [#allocation12], 0
    %29 = vsyncpa [#allocation15], 0
    %30 = vsyncpa [#allocation4], 0
    %31 = vsyncpa [#allocation19], 0
    // Predicated region
    $region2: #{tpu_custom_call.1} parent=1 // pred_check
      _
    $region3: #{tpu_custom_call.1} parent=1 // pred_check_branch
      %33 = sbr.rel (0) target = $region5
    $region4: #{tpu_custom_call.1} parent=1 // pred_region
      _
    $region5: #{tpu_custom_call.1} parent=1 // pred_fallthru
      _
    // Predicated region
    $region6: #{tpu_custom_call.1} parent=1 // pred_check
      _
    $region7: #{tpu_custom_call.1} parent=1 // pred_check_branch
      %35 = sbr.rel (0) target = $region9
    $region8: #{tpu_custom_call.1} parent=1 // pred_region
      %37 = vsyncadd [#allocation3], 0
      %s38 = sshll.u32 %s1, 4
      %s39 = int_to_ptr.hbm [resolvable:$true] %s38
      %s40 = sshll.u32 [#allocation2], 4
      %s41 = int_to_ptr.vmem [resolvable:$true] %s40
      %46 = dma.hbm_to_vmem [thread:$0]  %s39, 256, %s41, [#allocation3], 128, 128, 8
    $region9: #{tpu_custom_call.1} parent=1 // pred_fallthru
      _
    // Predicated region
    $region10: #{tpu_custom_call.1} parent=1 // pred_check
      _
    $region11: #{tpu_custom_call.1} parent=1 // pred_check_branch
      %48 = sbr.rel (0) target = $region13
    $region12: #{tpu_custom_call.1} parent=1 // pred_region
      %50 = vsyncadd [#allocation6], 0
      %s51 = sshll.u32 %s2, 4
      %s52 = int_to_ptr.hbm [resolvable:$true] %s51
      %s53 = sshll.u32 [#allocation5], 4
      %s54 = int_to_ptr.vmem [resolvable:$true] %s53
      %59 = dma.hbm_to_vmem [thread:$0]  %s52, 256, %s54, [#allocation6], 128, 128, 8
    $region13: #{tpu_custom_call.1} parent=1 // pred_fallthru
      _
    // Predicated region
    $region14: #{tpu_custom_call.1} parent=1 // pred_check
      _
    $region15: #{tpu_custom_call.1} parent=1 // pred_check_branch
      %61 = sbr.rel (0) target = $region17
    $region16: #{tpu_custom_call.1} parent=1 // pred_region
      _
    $region17: #{tpu_custom_call.1} parent=1 // pred_fallthru
      _
    // Predicated region
    $region18: #{tpu_custom_call.1} parent=1 // pred_check
      _
    $region19: #{tpu_custom_call.1} parent=1 // pred_check_branch
      %63 = sbr.rel (0) target = $region21
    $region20: #{tpu_custom_call.1} parent=1 // pred_region
      %65 = vsyncadd [#allocation6], 0
      %s66 = sshll.u32 %s4, 4
      %s67 = int_to_ptr.hbm [resolvable:$true] %s66
      %s68 = sshll.u32 [#allocation7], 4
      %s69 = int_to_ptr.vmem [resolvable:$true] %s68
      %74 = dma.hbm_to_vmem [thread:$0]  %s67, 512, %s69, [#allocation6], 128, 128, 8
    $region21: #{tpu_custom_call.1} parent=1 // pred_fallthru
      _
    // Predicated region
    $region22: #{tpu_custom_call.1} parent=1 // pred_check
      _
    $region23: #{tpu_custom_call.1} parent=1 // pred_check_branch
      %76 = sbr.rel (0) target = $region25
    $region24: #{tpu_custom_call.1} parent=1 // pred_region
      %78 = vsyncadd [#allocation9], 0
      %s79 = sshll.u32 %s5, 4
      %s80 = int_to_ptr.hbm [resolvable:$true] %s79
      %s81 = sshll.u32 [#allocation8], 4
      %s82 = int_to_ptr.vmem [resolvable:$true] %s81
      %87 = dma.hbm_to_vmem [thread:$0]  %s80, 512, %s82, [#allocation9], 128, 128, 8
    $region25: #{tpu_custom_call.1} parent=1 // pred_fallthru
      _
    // Predicated region
    $region26: #{tpu_custom_call.1} parent=1 // pred_check
      _
    $region27: #{tpu_custom_call.1} parent=1 // pred_check_branch
      %89 = sbr.rel (0) target = $region29
    $region28: #{tpu_custom_call.1} parent=1 // pred_region
      _
    $region29: #{tpu_custom_call.1} parent=1 // pred_fallthru
      _
    // Predicated region
    $region30: #{tpu_custom_call.1} parent=1 // pred_check
      _
    $region31: #{tpu_custom_call.1} parent=1 // pred_check_branch
      %91 = sbr.rel (0) target = $region33
    $region32: #{tpu_custom_call.1} parent=1 // pred_region
      _
    $region33: #{tpu_custom_call.1} parent=1 // pred_fallthru
      _
    // Predicated region
    $region34: #{tpu_custom_call.1} parent=1 // pred_check
      _
    $region35: #{tpu_custom_call.1} parent=1 // pred_check_branch
      %93 = sbr.rel (0) target = $region37
    $region36: #{tpu_custom_call.1} parent=1 // pred_region
      _
    $region37: #{tpu_custom_call.1} parent=1 // pred_fallthru
      _
    // Predicated region
    $region38: #{tpu_custom_call.1} parent=1 // pred_check
      _
    $region39: #{tpu_custom_call.1} parent=1 // pred_check_branch
      %95 = sbr.rel (0) target = $region41
    $region40: #{tpu_custom_call.1} parent=1 // pred_region
      %97 = vsyncadd [#allocation9], 0
      %s98 = sshll.u32 %s9, 4
      %s99 = int_to_ptr.hbm [resolvable:$true] %s98
      %s100 = sshll.u32 [#allocation10], 4
      %s101 = int_to_ptr.vmem [resolvable:$true] %s100
      %106 = dma.hbm_to_vmem [thread:$0]  %s99, 1024, %s101, [#allocation9], 128, 128, 8
    $region41: #{tpu_custom_call.1} parent=1 // pred_fallthru
      _
    // Predicated region
    $region42: #{tpu_custom_call.1} parent=1 // pred_check
      _
    $region43: #{tpu_custom_call.1} parent=1 // pred_check_branch
      %108 = sbr.rel (0) target = $region45
    $region44: #{tpu_custom_call.1} parent=1 // pred_region
      %110 = vsyncadd [#allocation12], 0
      %s111 = sshll.u32 %s10, 4
      %s112 = int_to_ptr.hbm [resolvable:$true] %s111
      %s113 = sshll.u32 [#allocation11], 4
      %s114 = int_to_ptr.vmem [resolvable:$true] %s113
      %119 = dma.hbm_to_vmem [thread:$0]  %s112, 512, %s114, [#allocation12], 128, 128, 8
    $region45: #{tpu_custom_call.1} parent=1 // pred_fallthru
      _
    // Predicated region
    $region46: #{tpu_custom_call.1} parent=1 // pred_check
      _
    $region47: #{tpu_custom_call.1} parent=1 // pred_check_branch
      %121 = sbr.rel (0) target = $region49
    $region48: #{tpu_custom_call.1} parent=1 // pred_region
      %123 = vsyncadd [#allocation12], 0
      %s124 = sshll.u32 %s11, 4
      %s125 = int_to_ptr.hbm [resolvable:$true] %s124
      %s126 = sshll.u32 [#allocation13], 4
      %s127 = int_to_ptr.vmem [resolvable:$true] %s126
      %132 = dma.hbm_to_vmem [thread:$0]  %s125, 512, %s127, [#allocation12], 128, 128, 8
    $region49: #{tpu_custom_call.1} parent=1 // pred_fallthru
      _
    // Predicated region
    $region50: #{tpu_custom_call.1} parent=1 // pred_check
      _
    $region51: #{tpu_custom_call.1} parent=1 // pred_check_branch
      %134 = sbr.rel (0) target = $region53
    $region52: #{tpu_custom_call.1} parent=1 // pred_region
      _
    $region53: #{tpu_custom_call.1} parent=1 // pred_fallthru
      _
    // Predicated region
    $region54: #{tpu_custom_call.1} parent=1 // pred_check
      _
    $region55: #{tpu_custom_call.1} parent=1 // pred_check_branch
      %136 = sbr.rel (0) target = $region57
    $region56: #{tpu_custom_call.1} parent=1 // pred_region
      _
    $region57: #{tpu_custom_call.1} parent=1 // pred_fallthru
      _
    // Predicated region
    $region58: #{tpu_custom_call.1} parent=1 // pred_check
      _
    $region59: #{tpu_custom_call.1} parent=1 // pred_check_branch
      %138 = sbr.rel (0) target = $region61
    $region60: #{tpu_custom_call.1} parent=1 // pred_region
      %140 = vsyncadd [#allocation15], 0
      %s141 = sshll.u32 %s14, 4
      %s142 = int_to_ptr.hbm [resolvable:$true] %s141
      %s143 = sshll.u32 [#allocation14], 4
      %s144 = int_to_ptr.vmem [resolvable:$true] %s143
      %149 = dma.hbm_to_vmem [thread:$0]  %s142, 256, %s144, [#allocation15], 128, 128, 8
    $region61: #{tpu_custom_call.1} parent=1 // pred_fallthru
      _
    // Predicated region
    $region62: #{tpu_custom_call.1} parent=1 // pred_check
      _
    $region63: #{tpu_custom_call.1} parent=1 // pred_check_branch
      %151 = sbr.rel (0) target = $region65
    $region64: #{tpu_custom_call.1} parent=1 // pred_region
      %153 = vsyncadd [#allocation15], 0
      %s154 = sshll.u32 %s15, 4
      %s155 = int_to_ptr.hbm [resolvable:$true] %s154
      %s156 = sshll.u32 [#allocation16], 4
      %s157 = int_to_ptr.vmem [resolvable:$true] %s156
      %162 = dma.hbm_to_vmem [thread:$0]  %s155, 256, %s157, [#allocation15], 128, 128, 8
    $region65: #{tpu_custom_call.1} parent=1 // pred_fallthru
      _
    // Predicated region
    $region66: #{tpu_custom_call.1} parent=1 // pred_check
      _
    $region67: #{tpu_custom_call.1} parent=1 // pred_check_branch
      %164 = sbr.rel (0) target = $region69
    $region68: #{tpu_custom_call.1} parent=1 // pred_region
      _
    $region69: #{tpu_custom_call.1} parent=1 // pred_fallthru
      _
    // Predicated region
    $region70: #{tpu_custom_call.1} parent=1 // pred_check
      _
    $region71: #{tpu_custom_call.1} parent=1 // pred_check_branch
      %166 = sbr.rel (0) target = $region73
    $region72: #{tpu_custom_call.1} parent=1 // pred_region
      _
    $region73: #{tpu_custom_call.1} parent=1 // pred_fallthru
      _
    // Predicated region
    $region74: #{tpu_custom_call.1} parent=1 // pred_check
      _
    $region75: #{tpu_custom_call.1} parent=1 // pred_check_branch
      %168 = sbr.rel (0) target = $region77
    $region76: #{tpu_custom_call.1} parent=1 // pred_region
      %170 = dma.done [#allocation3], 256
    $region77: #{tpu_custom_call.1} parent=1 // pred_fallthru
      _
    // Predicated region
    $region78: #{tpu_custom_call.1} parent=1 // pred_check
      _
    $region79: #{tpu_custom_call.1} parent=1 // pred_check_branch
      %172 = sbr.rel (0) target = $region81
    $region80: #{tpu_custom_call.1} parent=1 // pred_region
      %174 = dma.done [#allocation6], 256
    $region81: #{tpu_custom_call.1} parent=1 // pred_fallthru
      _
    // Predicated region
    $region82: #{tpu_custom_call.1} parent=1 // pred_check
      _
    $region83: #{tpu_custom_call.1} parent=1 // pred_check_branch
      %176 = sbr.rel (0) target = $region85
    $region84: #{tpu_custom_call.1} parent=1 // pred_region
      %178 = dma.done [#allocation6], 512
    $region85: #{tpu_custom_call.1} parent=1 // pred_fallthru
      _
    // Predicated region
    $region86: #{tpu_custom_call.1} parent=1 // pred_check
      _
    $region87: #{tpu_custom_call.1} parent=1 // pred_check_branch
      %180 = sbr.rel (0) target = $region89
    $region88: #{tpu_custom_call.1} parent=1 // pred_region
      %182 = dma.done [#allocation9], 512
    $region89: #{tpu_custom_call.1} parent=1 // pred_fallthru
      _
    // Predicated region
    $region90: #{tpu_custom_call.1} parent=1 // pred_check
      _
    $region91: #{tpu_custom_call.1} parent=1 // pred_check_branch
      %184 = sbr.rel (0) target = $region93
    $region92: #{tpu_custom_call.1} parent=1 // pred_region
      %186 = dma.done [#allocation9], 1024
    $region93: #{tpu_custom_call.1} parent=1 // pred_fallthru
      _
    // Predicated region
    $region94: #{tpu_custom_call.1} parent=1 // pred_check
      _
    $region95: #{tpu_custom_call.1} parent=1 // pred_check_branch
      %188 = sbr.rel (0) target = $region97
    $region96: #{tpu_custom_call.1} parent=1 // pred_region
      %190 = dma.done [#allocation12], 512
    $region97: #{tpu_custom_call.1} parent=1 // pred_fallthru
      _
    // Predicated region
    $region98: #{tpu_custom_call.1} parent=1 // pred_check
      _
    $region99: #{tpu_custom_call.1} parent=1 // pred_check_branch
      %192 = sbr.rel (0) target = $region101
    $region100: #{tpu_custom_call.1} parent=1 // pred_region
      %194 = dma.done [#allocation12], 512
    $region101: #{tpu_custom_call.1} parent=1 // pred_fallthru
      _
    // Predicated region
    $region102: #{tpu_custom_call.1} parent=1 // pred_check
      _
    $region103: #{tpu_custom_call.1} parent=1 // pred_check_branch
      %196 = sbr.rel (0) target = $region105
    $region104: #{tpu_custom_call.1} parent=1 // pred_region
      %198 = dma.done [#allocation15], 256
    $region105: #{tpu_custom_call.1} parent=1 // pred_fallthru
      _
    // Predicated region
    $region106: #{tpu_custom_call.1} parent=1 // pred_check
      _
    $region107: #{tpu_custom_call.1} parent=1 // pred_check_branch
      %200 = sbr.rel (0) target = $region109
    $region108: #{tpu_custom_call.1} parent=1 // pred_region
      %202 = dma.done [#allocation15], 256
    $region109: #{tpu_custom_call.1} parent=1 // pred_fallthru
      _
    %v203 = vld [vmem:[%s0] sm:$0x1]
    %v204 = vld [vmem:[%s3] sm:$0xff]
    %v205 = vld [vmem:[%s3 + $0x8] sm:$0xff]
    %v206 = vld [vmem:[%s3 + $0x10] sm:$0xff]
    %v207 = vld [vmem:[%s3 + $0x18] sm:$0xff]
    %v209 = vperm.slane %v203, 0
    %v211 = vmul.f32 %v209, %v204
    %v212 = vmul.f32 %v209, %v205
    %v213 = vmul.f32 %v209, %v206
    %v214 = vmul.f32 %v209, %v207
    %v215 = vand.u32 2147483647, %v211
    %vm216 = vcmp.le.f32.partialorder %v215, 0.7853982
    %vm217 = vcmp.lt.s32.totalorder %v211, 0
    %v218 = vand.u32 %v211, 2139095040
    %v219 = vshrl.u32 %v218, 23
    %v220 = vsub.s32 %v219, 127
    %v221 = vand.u32 2147483647, %v211
    %v222 = vand.u32 %v221, 8388607
    %v223 = vor.u32 %v222, 8388608
    %v224 = vsub.s32 0, %v223
    %v225 = vadd.s32 %v220, 1
    %vm226 = vcmp.gt.s32.totalorder %v225, 0
    %v227 = vsel %vm226, %v225, 0
    %v228 = vshrl.u32 %v227, 5
    %v229 = vand.u32 %v227, 31
    %v230 = vsub.s32 32, %v229
    %v231 = vshrl.u32 683565275, %v230
    %v232 = vshll.u32 683565275, %v229
    %v233 = vshrl.u32 2475754826, %v230
    %v234 = vor.u32 %v232, %v233
    %v235 = vshll.u32 2475754826, %v229
    %v236 = vshrl.u32 2131351028, %v230
    %v237 = vor.u32 %v235, %v236
    %v238 = vshll.u32 2131351028, %v229
    %v239 = vshrl.u32 2102212464, %v230
    %v240 = vor.u32 %v238, %v239
    %v241 = vshll.u32 2102212464, %v229
    %v242 = vshrl.u32 920167782, %v230
    %v243 = vor.u32 %v241, %v242
    %v244 = vshll.u32 920167782, %v229
    %v245 = vshrl.u32 1326507024, %v230
    %v246 = vor.u32 %v244, %v245
    %vm247 = vcmp.lt.s32.totalorder %v228, 1
    %vm248 = vcmp.lt.s32.totalorder %v228, 2
    %vm249 = vcmp.lt.s32.totalorder %v228, 3
    %vm250 = vcmp.lt.s32.totalorder %v228, 4
    %v251 = vsel %vm247, %v231, %v234
    %v252 = vsel %vm250, %v240, 2102212464
    %v253 = vsel %vm249, %v237, %v252
    %v254 = vsel %vm248, %v251, %v253
    %v255 = vsel %vm247, %v234, %v237
    %v256 = vsel %vm250, %v243, 920167782
    %v257 = vsel %vm249, %v240, %v256
    %v258 = vsel %vm248, %v255, %v257
    %v259 = vsel %vm247, %v237, %v240
    %v260 = vsel %vm250, %v246, 1326507024
    %v261 = vsel %vm249, %v243, %v260
    %v262 = vsel %vm248, %v259, %v261
    %v263 = vshll.u32 %v223, 8
    %v264 = vand.u32 %v263, 65535
    %v265 = vshrl.u32 %v263, 16
    %v266 = vand.u32 %v262, 65535
    %v267 = vshrl.u32 %v262, 16
    %v268 = vmul.u32 %v264, %v266
    %v269 = vmul.u32 %v264, %v267
    %v270 = vmul.u32 %v265, %v266
    %v271 = vmul.u32 %v265, %v267
    %v272 = vshll.u32 %v269, 16
    %v273 = vshrl.u32 %v269, 16
    %v274 = vshll.u32 %v270, 16
    %v275 = vshrl.u32 %v270, 16
    %vm276 = vc.u32 %v268, %v272
    %v277 = vsel %vm276, 1, 0
    %v278 = vadd.s32 %v268, %v272
    %v279 = vadd.s32 %v271, %v277
    %vm280 = vc.u32 %v278, %v274
    %v281 = vsel %vm280, 1, 0
    %v282 = vadd.s32 %v278, %v274
    %v283 = vadd.s32 %v279, %v281
    %v284 = vadd.s32 %v283, %v273
    %v285 = vadd.s32 %v284, %v275
    %v286 = vand.u32 %v263, 65535
    %v287 = vshrl.u32 %v263, 16
    %v288 = vand.u32 %v258, 65535
    %v289 = vshrl.u32 %v258, 16
    %v290 = vmul.u32 %v286, %v288
    %v291 = vmul.u32 %v286, %v289
    %v292 = vmul.u32 %v287, %v288
    %v293 = vmul.u32 %v287, %v289
    %v294 = vshll.u32 %v291, 16
    %v295 = vshrl.u32 %v291, 16
    %v296 = vshll.u32 %v292, 16
    %v297 = vshrl.u32 %v292, 16
    %vm298 = vc.u32 %v290, %v294
    %v299 = vsel %vm298, 1, 0
    %v300 = vadd.s32 %v290, %v294
    %v301 = vadd.s32 %v293, %v299
    %vm302 = vc.u32 %v300, %v296
    %v303 = vsel %vm302, 1, 0
    %v304 = vadd.s32 %v300, %v296
    %v305 = vadd.s32 %v301, %v303
    %v306 = vadd.s32 %v305, %v295
    %v307 = vadd.s32 %v306, %v297
    %v308 = vmul.u32 %v263, %v254
    %v309 = vadd.s32 %v285, %v304
    %vm310 = vc.u32 %v285, %v304
    %v311 = vadd.s32 %v307, 1
    %v312 = vsel %vm310, %v311, %v307
    %v313 = vadd.s32 %v308, %v312
    %v314 = vadd.s32 %v313, 536870912
    %v315 = vshrl.u32 %v314, 30
    %v316 = vshll.u32 %v315, 30
    %v317 = vsub.s32 %v313, %v316
    %vm318 = vcmp.lt.s32.totalorder %v317, 0
    %v319 = vsub.s32 0, %v317
    %v320 = vsel %vm318, %v319, %v317
    %v321 = vclz %v320
    %v322 = vsub.s32 %v321, 2
    %vm323 = vcmp.gt.s32.totalorder 0, %v322
    %v324 = vsel %vm323, 0, %v322
    %v325 = vsub.s32 32, %v324
    %v326 = vshll.u32 %v317, %v324
    %v327 = vshrl.u32 %v309, %v325
    %v328 = vor.u32 %v326, %v327
    %v329 = vsub.s32 4294967266, %v324
    %v330 = vadd.s32 %v329, 127
    %v331 = vshll.u32 %v330, 23
    %v332 = vor.u32 4788187, %v331
    %v333 = vand.u32 2147483647, %v332
    %v335 = vcvt.s32.f32 %v328
    %v336 = vmul.f32 %v335, %v333
    %v337 = vxor.u32 %v336, 2147483648
    %v338 = vsel %vm217, %v337, %v336
    %v339 = vsub.s32 4, %v315
    %v340 = vsel %vm217, %v339, %v315
    %v341 = vsel %vm216, %v211, %v338
    %v342 = vsel %vm216, 0, %v340
    %v343 = vmul.f32 %v341, %v341
    %v344 = vmul.f32 %v343, -0.001358992
    %v345 = vadd.f32 %v344, 0.041655596
    %v346 = vmul.f32 %v343, %v345
    %v347 = vadd.f32 %v346, -0.4999988
    %v348 = vmul.f32 %v343, %v347
    %v349 = vadd.f32 1.0, %v348
    %v350 = vmul.f32 %v341, %v341
    %v351 = vmul.f32 %v350, -0.00019511016
    %v352 = vadd.f32 %v351, 0.008332121
    %v353 = vmul.f32 %v350, %v352
    %v354 = vadd.f32 %v353, -0.16666654
    %v355 = vmul.f32 %v350, %v354
    %v356 = vadd.f32 %v355, 1.0
    %v357 = vmul.f32 %v356, %v341
    %vm358 = vweird.f32 %v211
    %v359 = vand.u32 %v342, 3
    %vm360 = vcmp.lt.s32.totalorder %v359, 2
    %vm361 = vcmp.eq.s32.totalorder %v359, 0
    %v362 = vxor.u32 %v357, 2147483648
    %v363 = vsel %vm361, %v349, %v362
    %vm364 = vcmp.eq.s32.totalorder %v359, 2
    %v365 = vxor.u32 %v349, 2147483648
    %v366 = vsel %vm364, %v365, %v357
    %v367 = vsel %vm360, %v363, %v366
    %v368 = vsel %vm358, nan, %v367
    %v369 = vand.u32 2147483647, %v212
    %vm370 = vcmp.le.f32.partialorder %v369, 0.7853982
    %vm371 = vcmp.lt.s32.totalorder %v212, 0
    %v372 = vand.u32 %v212, 2139095040
    %v373 = vshrl.u32 %v372, 23
    %v374 = vsub.s32 %v373, 127
    %v375 = vand.u32 2147483647, %v212
    %v376 = vand.u32 %v375, 8388607
    %v377 = vor.u32 %v376, 8388608
    %v378 = vsub.s32 0, %v377
    %v379 = vadd.s32 %v374, 1
    %vm380 = vcmp.gt.s32.totalorder %v379, 0
    %v381 = vsel %vm380, %v379, 0
    %v382 = vshrl.u32 %v381, 5
    %v383 = vand.u32 %v381, 31
    %v384 = vsub.s32 32, %v383
    %v385 = vshrl.u32 683565275, %v384
    %v386 = vshll.u32 683565275, %v383
    %v387 = vshrl.u32 2475754826, %v384
    %v388 = vor.u32 %v386, %v387
    %v389 = vshll.u32 2475754826, %v383
    %v390 = vshrl.u32 2131351028, %v384
    %v391 = vor.u32 %v389, %v390
    %v392 = vshll.u32 2131351028, %v383
    %v393 = vshrl.u32 2102212464, %v384
    %v394 = vor.u32 %v392, %v393
    %v395 = vshll.u32 2102212464, %v383
    %v396 = vshrl.u32 920167782, %v384
    %v397 = vor.u32 %v395, %v396
    %v398 = vshll.u32 920167782, %v383
    %v399 = vshrl.u32 1326507024, %v384
    %v400 = vor.u32 %v398, %v399
    %vm401 = vcmp.lt.s32.totalorder %v382, 1
    %vm402 = vcmp.lt.s32.totalorder %v382, 2
    %vm403 = vcmp.lt.s32.totalorder %v382, 3
    %vm404 = vcmp.lt.s32.totalorder %v382, 4
    %v405 = vsel %vm401, %v385, %v388
    %v406 = vsel %vm404, %v394, 2102212464
    %v407 = vsel %vm403, %v391, %v406
    %v408 = vsel %vm402, %v405, %v407
    %v409 = vsel %vm401, %v388, %v391
    %v410 = vsel %vm404, %v397, 920167782
    %v411 = vsel %vm403, %v394, %v410
    %v412 = vsel %vm402, %v409, %v411
    %v413 = vsel %vm401, %v391, %v394
    %v414 = vsel %vm404, %v400, 1326507024
    %v415 = vsel %vm403, %v397, %v414
    %v416 = vsel %vm402, %v413, %v415
    %v417 = vshll.u32 %v377, 8
    %v418 = vand.u32 %v417, 65535
    %v419 = vshrl.u32 %v417, 16
    %v420 = vand.u32 %v416, 65535
    %v421 = vshrl.u32 %v416, 16
    %v422 = vmul.u32 %v418, %v420
    %v423 = vmul.u32 %v418, %v421
    %v424 = vmul.u32 %v419, %v420
    %v425 = vmul.u32 %v419, %v421
    %v426 = vshll.u32 %v423, 16
    %v427 = vshrl.u32 %v423, 16
    %v428 = vshll.u32 %v424, 16
    %v429 = vshrl.u32 %v424, 16
    %vm430 = vc.u32 %v422, %v426
    %v431 = vsel %vm430, 1, 0
    %v432 = vadd.s32 %v422, %v426
    %v433 = vadd.s32 %v425, %v431
    %vm434 = vc.u32 %v432, %v428
    %v435 = vsel %vm434, 1, 0
    %v436 = vadd.s32 %v432, %v428
    %v437 = vadd.s32 %v433, %v435
    %v438 = vadd.s32 %v437, %v427
    %v439 = vadd.s32 %v438, %v429
    %v440 = vand.u32 %v417, 65535
    %v441 = vshrl.u32 %v417, 16
    %v442 = vand.u32 %v412, 65535
    %v443 = vshrl.u32 %v412, 16
    %v444 = vmul.u32 %v440, %v442
    %v445 = vmul.u32 %v440, %v443
    %v446 = vmul.u32 %v441, %v442
    %v447 = vmul.u32 %v441, %v443
    %v448 = vshll.u32 %v445, 16
    %v449 = vshrl.u32 %v445, 16
    %v450 = vshll.u32 %v446, 16
    %v451 = vshrl.u32 %v446, 16
    %vm452 = vc.u32 %v444, %v448
    %v453 = vsel %vm452, 1, 0
    %v454 = vadd.s32 %v444, %v448
    %v455 = vadd.s32 %v447, %v453
    %vm456 = vc.u32 %v454, %v450
    %v457 = vsel %vm456, 1, 0
    %v458 = vadd.s32 %v454, %v450
    %v459 = vadd.s32 %v455, %v457
    %v460 = vadd.s32 %v459, %v449
    %v461 = vadd.s32 %v460, %v451
    %v462 = vmul.u32 %v417, %v408
    %v463 = vadd.s32 %v439, %v458
    %vm464 = vc.u32 %v439, %v458
    %v465 = vadd.s32 %v461, 1
    %v466 = vsel %vm464, %v465, %v461
    %v467 = vadd.s32 %v462, %v466
    %v468 = vadd.s32 %v467, 536870912
    %v469 = vshrl.u32 %v468, 30
    %v470 = vshll.u32 %v469, 30
    %v471 = vsub.s32 %v467, %v470
    %vm472 = vcmp.lt.s32.totalorder %v471, 0
    %v473 = vsub.s32 0, %v471
    %v474 = vsel %vm472, %v473, %v471
    %v475 = vclz %v474
    %v476 = vsub.s32 %v475, 2
    %vm477 = vcmp.gt.s32.totalorder 0, %v476
    %v478 = vsel %vm477, 0, %v476
    %v479 = vsub.s32 32, %v478
    %v480 = vshll.u32 %v471, %v478
    %v481 = vshrl.u32 %v463, %v479
    %v482 = vor.u32 %v480, %v481
    %v483 = vsub.s32 4294967266, %v478
    %v484 = vadd.s32 %v483, 127
    %v485 = vshll.u32 %v484, 23
    %v486 = vor.u32 4788187, %v485
    %v487 = vand.u32 2147483647, %v486
    %v489 = vcvt.s32.f32 %v482
    %v490 = vmul.f32 %v489, %v487
    %v491 = vxor.u32 %v490, 2147483648
    %v492 = vsel %vm371, %v491, %v490
    %v493 = vsub.s32 4, %v469
    %v494 = vsel %vm371, %v493, %v469
    %v495 = vsel %vm370, %v212, %v492
    %v496 = vsel %vm370, 0, %v494
    %v497 = vmul.f32 %v495, %v495
    %v498 = vmul.f32 %v497, -0.001358992
    %v499 = vadd.f32 %v498, 0.041655596
    %v500 = vmul.f32 %v497, %v499
    %v501 = vadd.f32 %v500, -0.4999988
    %v502 = vmul.f32 %v497, %v501
    %v503 = vadd.f32 1.0, %v502
    %v504 = vmul.f32 %v495, %v495
    %v505 = vmul.f32 %v504, -0.00019511016
    %v506 = vadd.f32 %v505, 0.008332121
    %v507 = vmul.f32 %v504, %v506
    %v508 = vadd.f32 %v507, -0.16666654
    %v509 = vmul.f32 %v504, %v508
    %v510 = vadd.f32 %v509, 1.0
    %v511 = vmul.f32 %v510, %v495
    %vm512 = vweird.f32 %v212
    %v513 = vand.u32 %v496, 3
    %vm514 = vcmp.lt.s32.totalorder %v513, 2
    %vm515 = vcmp.eq.s32.totalorder %v513, 0
    %v516 = vxor.u32 %v511, 2147483648
    %v517 = vsel %vm515, %v503, %v516
    %vm518 = vcmp.eq.s32.totalorder %v513, 2
    %v519 = vxor.u32 %v503, 2147483648
    %v520 = vsel %vm518, %v519, %v511
    %v521 = vsel %vm514, %v517, %v520
    %v522 = vsel %vm512, nan, %v521
    %v523 = vand.u32 2147483647, %v213
    %vm524 = vcmp.le.f32.partialorder %v523, 0.7853982
    %vm525 = vcmp.lt.s32.totalorder %v213, 0
    %v526 = vand.u32 %v213, 2139095040
    %v527 = vshrl.u32 %v526, 23
    %v528 = vsub.s32 %v527, 127
    %v529 = vand.u32 2147483647, %v213
    %v530 = vand.u32 %v529, 8388607
    %v531 = vor.u32 %v530, 8388608
    %v532 = vsub.s32 0, %v531
    %v533 = vadd.s32 %v528, 1
    %vm534 = vcmp.gt.s32.totalorder %v533, 0
    %v535 = vsel %vm534, %v533, 0
    %v536 = vshrl.u32 %v535, 5
    %v537 = vand.u32 %v535, 31
    %v538 = vsub.s32 32, %v537
    %v539 = vshrl.u32 683565275, %v538
    %v540 = vshll.u32 683565275, %v537
    %v541 = vshrl.u32 2475754826, %v538
    %v542 = vor.u32 %v540, %v541
    %v543 = vshll.u32 2475754826, %v537
    %v544 = vshrl.u32 2131351028, %v538
    %v545 = vor.u32 %v543, %v544
    %v546 = vshll.u32 2131351028, %v537
    %v547 = vshrl.u32 2102212464, %v538
    %v548 = vor.u32 %v546, %v547
    %v549 = vshll.u32 2102212464, %v537
    %v550 = vshrl.u32 920167782, %v538
    %v551 = vor.u32 %v549, %v550
    %v552 = vshll.u32 920167782, %v537
    %v553 = vshrl.u32 1326507024, %v538
    %v554 = vor.u32 %v552, %v553
    %vm555 = vcmp.lt.s32.totalorder %v536, 1
    %vm556 = vcmp.lt.s32.totalorder %v536, 2
    %vm557 = vcmp.lt.s32.totalorder %v536, 3
    %vm558 = vcmp.lt.s32.totalorder %v536, 4
    %v559 = vsel %vm555, %v539, %v542
    %v560 = vsel %vm558, %v548, 2102212464
    %v561 = vsel %vm557, %v545, %v560
    %v562 = vsel %vm556, %v559, %v561
    %v563 = vsel %vm555, %v542, %v545
    %v564 = vsel %vm558, %v551, 920167782
    %v565 = vsel %vm557, %v548, %v564
    %v566 = vsel %vm556, %v563, %v565
    %v567 = vsel %vm555, %v545, %v548
    %v568 = vsel %vm558, %v554, 1326507024
    %v569 = vsel %vm557, %v551, %v568
    %v570 = vsel %vm556, %v567, %v569
    %v571 = vshll.u32 %v531, 8
    %v572 = vand.u32 %v571, 65535
    %v573 = vshrl.u32 %v571, 16
    %v574 = vand.u32 %v570, 65535
    %v575 = vshrl.u32 %v570, 16
    %v576 = vmul.u32 %v572, %v574
    %v577 = vmul.u32 %v572, %v575
    %v578 = vmul.u32 %v573, %v574
    %v579 = vmul.u32 %v573, %v575
    %v580 = vshll.u32 %v577, 16
    %v581 = vshrl.u32 %v577, 16
    %v582 = vshll.u32 %v578, 16
    %v583 = vshrl.u32 %v578, 16
    %vm584 = vc.u32 %v576, %v580
    %v585 = vsel %vm584, 1, 0
    %v586 = vadd.s32 %v576, %v580
    %v587 = vadd.s32 %v579, %v585
    %vm588 = vc.u32 %v586, %v582
    %v589 = vsel %vm588, 1, 0
    %v590 = vadd.s32 %v586, %v582
    %v591 = vadd.s32 %v587, %v589
    %v592 = vadd.s32 %v591, %v581
    %v593 = vadd.s32 %v592, %v583
    %v594 = vand.u32 %v571, 65535
    %v595 = vshrl.u32 %v571, 16
    %v596 = vand.u32 %v566, 65535
    %v597 = vshrl.u32 %v566, 16
    %v598 = vmul.u32 %v594, %v596
    %v599 = vmul.u32 %v594, %v597
    %v600 = vmul.u32 %v595, %v596
    %v601 = vmul.u32 %v595, %v597
    %v602 = vshll.u32 %v599, 16
    %v603 = vshrl.u32 %v599, 16
    %v604 = vshll.u32 %v600, 16
    %v605 = vshrl.u32 %v600, 16
    %vm606 = vc.u32 %v598, %v602
    %v607 = vsel %vm606, 1, 0
    %v608 = vadd.s32 %v598, %v602
    %v609 = vadd.s32 %v601, %v607
    %vm610 = vc.u32 %v608, %v604
    %v611 = vsel %vm610, 1, 0
    %v612 = vadd.s32 %v608, %v604
    %v613 = vadd.s32 %v609, %v611
    %v614 = vadd.s32 %v613, %v603
    %v615 = vadd.s32 %v614, %v605
    %v616 = vmul.u32 %v571, %v562
    %v617 = vadd.s32 %v593, %v612
    %vm618 = vc.u32 %v593, %v612
    %v619 = vadd.s32 %v615, 1
    %v620 = vsel %vm618, %v619, %v615
    %v621 = vadd.s32 %v616, %v620
    %v622 = vadd.s32 %v621, 536870912
    %v623 = vshrl.u32 %v622, 30
    %v624 = vshll.u32 %v623, 30
    %v625 = vsub.s32 %v621, %v624
    %vm626 = vcmp.lt.s32.totalorder %v625, 0
    %v627 = vsub.s32 0, %v625
    %v628 = vsel %vm626, %v627, %v625
    %v629 = vclz %v628
    %v630 = vsub.s32 %v629, 2
    %vm631 = vcmp.gt.s32.totalorder 0, %v630
    %v632 = vsel %vm631, 0, %v630
    %v633 = vsub.s32 32, %v632
    %v634 = vshll.u32 %v625, %v632
    %v635 = vshrl.u32 %v617, %v633
    %v636 = vor.u32 %v634, %v635
    %v637 = vsub.s32 4294967266, %v632
    %v638 = vadd.s32 %v637, 127
    %v639 = vshll.u32 %v638, 23
    %v640 = vor.u32 4788187, %v639
    %v641 = vand.u32 2147483647, %v640
    %v643 = vcvt.s32.f32 %v636
    %v644 = vmul.f32 %v643, %v641
    %v645 = vxor.u32 %v644, 2147483648
    %v646 = vsel %vm525, %v645, %v644
    %v647 = vsub.s32 4, %v623
    %v648 = vsel %vm525, %v647, %v623
    %v649 = vsel %vm524, %v213, %v646
    %v650 = vsel %vm524, 0, %v648
    %v651 = vmul.f32 %v649, %v649
    %v652 = vmul.f32 %v651, -0.001358992
    %v653 = vadd.f32 %v652, 0.041655596
    %v654 = vmul.f32 %v651, %v653
    %v655 = vadd.f32 %v654, -0.4999988
    %v656 = vmul.f32 %v651, %v655
    %v657 = vadd.f32 1.0, %v656
    %v658 = vmul.f32 %v649, %v649
    %v659 = vmul.f32 %v658, -0.00019511016
    %v660 = vadd.f32 %v659, 0.008332121
    %v661 = vmul.f32 %v658, %v660
    %v662 = vadd.f32 %v661, -0.16666654
    %v663 = vmul.f32 %v658, %v662
    %v664 = vadd.f32 %v663, 1.0
    %v665 = vmul.f32 %v664, %v649
    %vm666 = vweird.f32 %v213
    %v667 = vand.u32 %v650, 3
    %vm668 = vcmp.lt.s32.totalorder %v667, 2
    %vm669 = vcmp.eq.s32.totalorder %v667, 0
    %v670 = vxor.u32 %v665, 2147483648
    %v671 = vsel %vm669, %v657, %v670
    %vm672 = vcmp.eq.s32.totalorder %v667, 2
    %v673 = vxor.u32 %v657, 2147483648
    %v674 = vsel %vm672, %v673, %v665
    %v675 = vsel %vm668, %v671, %v674
    %v676 = vsel %vm666, nan, %v675
    %v677 = vand.u32 2147483647, %v214
    %vm678 = vcmp.le.f32.partialorder %v677, 0.7853982
    %vm679 = vcmp.lt.s32.totalorder %v214, 0
    %v680 = vand.u32 %v214, 2139095040
    %v681 = vshrl.u32 %v680, 23
    %v682 = vsub.s32 %v681, 127
    %v683 = vand.u32 2147483647, %v214
    %v684 = vand.u32 %v683, 8388607
    %v685 = vor.u32 %v684, 8388608
    %v686 = vsub.s32 0, %v685
    %v687 = vadd.s32 %v682, 1
    %vm688 = vcmp.gt.s32.totalorder %v687, 0
    %v689 = vsel %vm688, %v687, 0
    %v690 = vshrl.u32 %v689, 5
    %v691 = vand.u32 %v689, 31
    %v692 = vsub.s32 32, %v691
    %v693 = vshrl.u32 683565275, %v692
    %v694 = vshll.u32 683565275, %v691
    %v695 = vshrl.u32 2475754826, %v692
    %v696 = vor.u32 %v694, %v695
    %v697 = vshll.u32 2475754826, %v691
    %v698 = vshrl.u32 2131351028, %v692
    %v699 = vor.u32 %v697, %v698
    %v700 = vshll.u32 2131351028, %v691
    %v701 = vshrl.u32 2102212464, %v692
    %v702 = vor.u32 %v700, %v701
    %v703 = vshll.u32 2102212464, %v691
    %v704 = vshrl.u32 920167782, %v692
    %v705 = vor.u32 %v703, %v704
    %v706 = vshll.u32 920167782, %v691
    %v707 = vshrl.u32 1326507024, %v692
    %v708 = vor.u32 %v706, %v707
    %vm709 = vcmp.lt.s32.totalorder %v690, 1
    %vm710 = vcmp.lt.s32.totalorder %v690, 2
    %vm711 = vcmp.lt.s32.totalorder %v690, 3
    %vm712 = vcmp.lt.s32.totalorder %v690, 4
    %v713 = vsel %vm709, %v693, %v696
    %v714 = vsel %vm712, %v702, 2102212464
    %v715 = vsel %vm711, %v699, %v714
    %v716 = vsel %vm710, %v713, %v715
    %v717 = vsel %vm709, %v696, %v699
    %v718 = vsel %vm712, %v705, 920167782
    %v719 = vsel %vm711, %v702, %v718
    %v720 = vsel %vm710, %v717, %v719
    %v721 = vsel %vm709, %v699, %v702
    %v722 = vsel %vm712, %v708, 1326507024
    %v723 = vsel %vm711, %v705, %v722
    %v724 = vsel %vm710, %v721, %v723
    %v725 = vshll.u32 %v685, 8
    %v726 = vand.u32 %v725, 65535
    %v727 = vshrl.u32 %v725, 16
    %v728 = vand.u32 %v724, 65535
    %v729 = vshrl.u32 %v724, 16
    %v730 = vmul.u32 %v726, %v728
    %v731 = vmul.u32 %v726, %v729
    %v732 = vmul.u32 %v727, %v728
    %v733 = vmul.u32 %v727, %v729
    %v734 = vshll.u32 %v731, 16
    %v735 = vshrl.u32 %v731, 16
    %v736 = vshll.u32 %v732, 16
    %v737 = vshrl.u32 %v732, 16
    %vm738 = vc.u32 %v730, %v734
    %v739 = vsel %vm738, 1, 0
    %v740 = vadd.s32 %v730, %v734
    %v741 = vadd.s32 %v733, %v739
    %vm742 = vc.u32 %v740, %v736
    %v743 = vsel %vm742, 1, 0
    %v744 = vadd.s32 %v740, %v736
    %v745 = vadd.s32 %v741, %v743
    %v746 = vadd.s32 %v745, %v735
    %v747 = vadd.s32 %v746, %v737
    %v748 = vand.u32 %v725, 65535
    %v749 = vshrl.u32 %v725, 16
    %v750 = vand.u32 %v720, 65535
    %v751 = vshrl.u32 %v720, 16
    %v752 = vmul.u32 %v748, %v750
    %v753 = vmul.u32 %v748, %v751
    %v754 = vmul.u32 %v749, %v750
    %v755 = vmul.u32 %v749, %v751
    %v756 = vshll.u32 %v753, 16
    %v757 = vshrl.u32 %v753, 16
    %v758 = vshll.u32 %v754, 16
    %v759 = vshrl.u32 %v754, 16
    %vm760 = vc.u32 %v752, %v756
    %v761 = vsel %vm760, 1, 0
    %v762 = vadd.s32 %v752, %v756
    %v763 = vadd.s32 %v755, %v761
    %vm764 = vc.u32 %v762, %v758
    %v765 = vsel %vm764, 1, 0
    %v766 = vadd.s32 %v762, %v758
    %v767 = vadd.s32 %v763, %v765
    %v768 = vadd.s32 %v767, %v757
    %v769 = vadd.s32 %v768, %v759
    %v770 = vmul.u32 %v725, %v716
    %v771 = vadd.s32 %v747, %v766
    %vm772 = vc.u32 %v747, %v766
    %v773 = vadd.s32 %v769, 1
    %v774 = vsel %vm772, %v773, %v769
    %v775 = vadd.s32 %v770, %v774
    %v776 = vadd.s32 %v775, 536870912
    %v777 = vshrl.u32 %v776, 30
    %v778 = vshll.u32 %v777, 30
    %v779 = vsub.s32 %v775, %v778
    %vm780 = vcmp.lt.s32.totalorder %v779, 0
    %v781 = vsub.s32 0, %v779
    %v782 = vsel %vm780, %v781, %v779
    %v783 = vclz %v782
    %v784 = vsub.s32 %v783, 2
    %vm785 = vcmp.gt.s32.totalorder 0, %v784
    %v786 = vsel %vm785, 0, %v784
    %v787 = vsub.s32 32, %v786
    %v788 = vshll.u32 %v779, %v786
    %v789 = vshrl.u32 %v771, %v787
    %v790 = vor.u32 %v788, %v789
    %v791 = vsub.s32 4294967266, %v786
    %v792 = vadd.s32 %v791, 127
    %v793 = vshll.u32 %v792, 23
    %v794 = vor.u32 4788187, %v793
    %v795 = vand.u32 2147483647, %v794
    %v797 = vcvt.s32.f32 %v790
    %v798 = vmul.f32 %v797, %v795
    %v799 = vxor.u32 %v798, 2147483648
    %v800 = vsel %vm679, %v799, %v798
    %v801 = vsub.s32 4, %v777
    %v802 = vsel %vm679, %v801, %v777
    %v803 = vsel %vm678, %v214, %v800
    %v804 = vsel %vm678, 0, %v802
    %v805 = vmul.f32 %v803, %v803
    %v806 = vmul.f32 %v805, -0.001358992
    %v807 = vadd.f32 %v806, 0.041655596
    %v808 = vmul.f32 %v805, %v807
    %v809 = vadd.f32 %v808, -0.4999988
    %v810 = vmul.f32 %v805, %v809
    %v811 = vadd.f32 1.0, %v810
    %v812 = vmul.f32 %v803, %v803
    %v813 = vmul.f32 %v812, -0.00019511016
    %v814 = vadd.f32 %v813, 0.008332121
    %v815 = vmul.f32 %v812, %v814
    %v816 = vadd.f32 %v815, -0.16666654
    %v817 = vmul.f32 %v812, %v816
    %v818 = vadd.f32 %v817, 1.0
    %v819 = vmul.f32 %v818, %v803
    %vm820 = vweird.f32 %v214
    %v821 = vand.u32 %v804, 3
    %vm822 = vcmp.lt.s32.totalorder %v821, 2
    %vm823 = vcmp.eq.s32.totalorder %v821, 0
    %v824 = vxor.u32 %v819, 2147483648
    %v825 = vsel %vm823, %v811, %v824
    %vm826 = vcmp.eq.s32.totalorder %v821, 2
    %v827 = vxor.u32 %v811, 2147483648
    %v828 = vsel %vm826, %v827, %v819
    %v829 = vsel %vm822, %v825, %v828
    %v830 = vsel %vm820, nan, %v829
    %v831 = vand.u32 2147483647, %v211
    %vm832 = vcmp.le.f32.partialorder %v831, 0.7853982
    %vm833 = vcmp.lt.s32.totalorder %v211, 0
    %v834 = vand.u32 %v211, 2139095040
    %v835 = vshrl.u32 %v834, 23
    %v836 = vsub.s32 %v835, 127
    %v837 = vand.u32 2147483647, %v211
    %v838 = vand.u32 %v837, 8388607
    %v839 = vor.u32 %v838, 8388608
    %v840 = vsub.s32 0, %v839
    %v841 = vadd.s32 %v836, 1
    %vm842 = vcmp.gt.s32.totalorder %v841, 0
    %v843 = vsel %vm842, %v841, 0
    %v844 = vshrl.u32 %v843, 5
    %v845 = vand.u32 %v843, 31
    %v846 = vsub.s32 32, %v845
    %v847 = vshrl.u32 683565275, %v846
    %v848 = vshll.u32 683565275, %v845
    %v849 = vshrl.u32 2475754826, %v846
    %v850 = vor.u32 %v848, %v849
    %v851 = vshll.u32 2475754826, %v845
    %v852 = vshrl.u32 2131351028, %v846
    %v853 = vor.u32 %v851, %v852
    %v854 = vshll.u32 2131351028, %v845
    %v855 = vshrl.u32 2102212464, %v846
    %v856 = vor.u32 %v854, %v855
    %v857 = vshll.u32 2102212464, %v845
    %v858 = vshrl.u32 920167782, %v846
    %v859 = vor.u32 %v857, %v858
    %v860 = vshll.u32 920167782, %v845
    %v861 = vshrl.u32 1326507024, %v846
    %v862 = vor.u32 %v860, %v861
    %vm863 = vcmp.lt.s32.totalorder %v844, 1
    %vm864 = vcmp.lt.s32.totalorder %v844, 2
    %vm865 = vcmp.lt.s32.totalorder %v844, 3
    %vm866 = vcmp.lt.s32.totalorder %v844, 4
    %v867 = vsel %vm863, %v847, %v850
    %v868 = vsel %vm866, %v856, 2102212464
    %v869 = vsel %vm865, %v853, %v868
    %v870 = vsel %vm864, %v867, %v869
    %v871 = vsel %vm863, %v850, %v853
    %v872 = vsel %vm866, %v859, 920167782
    %v873 = vsel %vm865, %v856, %v872
    %v874 = vsel %vm864, %v871, %v873
    %v875 = vsel %vm863, %v853, %v856
    %v876 = vsel %vm866, %v862, 1326507024
    %v877 = vsel %vm865, %v859, %v876
    %v878 = vsel %vm864, %v875, %v877
    %v879 = vshll.u32 %v839, 8
    %v880 = vand.u32 %v879, 65535
    %v881 = vshrl.u32 %v879, 16
    %v882 = vand.u32 %v878, 65535
    %v883 = vshrl.u32 %v878, 16
    %v884 = vmul.u32 %v880, %v882
    %v885 = vmul.u32 %v880, %v883
    %v886 = vmul.u32 %v881, %v882
    %v887 = vmul.u32 %v881, %v883
    %v888 = vshll.u32 %v885, 16
    %v889 = vshrl.u32 %v885, 16
    %v890 = vshll.u32 %v886, 16
    %v891 = vshrl.u32 %v886, 16
    %vm892 = vc.u32 %v884, %v888
    %v893 = vsel %vm892, 1, 0
    %v894 = vadd.s32 %v884, %v888
    %v895 = vadd.s32 %v887, %v893
    %vm896 = vc.u32 %v894, %v890
    %v897 = vsel %vm896, 1, 0
    %v898 = vadd.s32 %v894, %v890
    %v899 = vadd.s32 %v895, %v897
    %v900 = vadd.s32 %v899, %v889
    %v901 = vadd.s32 %v900, %v891
    %v902 = vand.u32 %v879, 65535
    %v903 = vshrl.u32 %v879, 16
    %v904 = vand.u32 %v874, 65535
    %v905 = vshrl.u32 %v874, 16
    %v906 = vmul.u32 %v902, %v904
    %v907 = vmul.u32 %v902, %v905
    %v908 = vmul.u32 %v903, %v904
    %v909 = vmul.u32 %v903, %v905
    %v910 = vshll.u32 %v907, 16
    %v911 = vshrl.u32 %v907, 16
    %v912 = vshll.u32 %v908, 16
    %v913 = vshrl.u32 %v908, 16
    %vm914 = vc.u32 %v906, %v910
    %v915 = vsel %vm914, 1, 0
    %v916 = vadd.s32 %v906, %v910
    %v917 = vadd.s32 %v909, %v915
    %vm918 = vc.u32 %v916, %v912
    %v919 = vsel %vm918, 1, 0
    %v920 = vadd.s32 %v916, %v912
    %v921 = vadd.s32 %v917, %v919
    %v922 = vadd.s32 %v921, %v911
    %v923 = vadd.s32 %v922, %v913
    %v924 = vmul.u32 %v879, %v870
    %v925 = vadd.s32 %v901, %v920
    %vm926 = vc.u32 %v901, %v920
    %v927 = vadd.s32 %v923, 1
    %v928 = vsel %vm926, %v927, %v923
    %v929 = vadd.s32 %v924, %v928
    %v930 = vadd.s32 %v929, 536870912
    %v931 = vshrl.u32 %v930, 30
    %v932 = vshll.u32 %v931, 30
    %v933 = vsub.s32 %v929, %v932
    %vm934 = vcmp.lt.s32.totalorder %v933, 0
    %v935 = vsub.s32 0, %v933
    %v936 = vsel %vm934, %v935, %v933
    %v937 = vclz %v936
    %v938 = vsub.s32 %v937, 2
    %vm939 = vcmp.gt.s32.totalorder 0, %v938
    %v940 = vsel %vm939, 0, %v938
    %v941 = vsub.s32 32, %v940
    %v942 = vshll.u32 %v933, %v940
    %v943 = vshrl.u32 %v925, %v941
    %v944 = vor.u32 %v942, %v943
    %v945 = vsub.s32 4294967266, %v940
    %v946 = vadd.s32 %v945, 127
    %v947 = vshll.u32 %v946, 23
    %v948 = vor.u32 4788187, %v947
    %v949 = vand.u32 2147483647, %v948
    %v951 = vcvt.s32.f32 %v944
    %v952 = vmul.f32 %v951, %v949
    %v953 = vxor.u32 %v952, 2147483648
    %v954 = vsel %vm833, %v953, %v952
    %v955 = vsub.s32 4, %v931
    %v956 = vsel %vm833, %v955, %v931
    %v957 = vsel %vm832, %v211, %v954
    %v958 = vsel %vm832, 0, %v956
    %v959 = vmul.f32 %v957, %v957
    %v960 = vmul.f32 %v959, -0.001358992
    %v961 = vadd.f32 %v960, 0.041655596
    %v962 = vmul.f32 %v959, %v961
    %v963 = vadd.f32 %v962, -0.4999988
    %v964 = vmul.f32 %v959, %v963
    %v965 = vadd.f32 1.0, %v964
    %v966 = vmul.f32 %v957, %v957
    %v967 = vmul.f32 %v966, -0.00019511016
    %v968 = vadd.f32 %v967, 0.008332121
    %v969 = vmul.f32 %v966, %v968
    %v970 = vadd.f32 %v969, -0.16666654
    %v971 = vmul.f32 %v966, %v970
    %v972 = vadd.f32 %v971, 1.0
    %v973 = vmul.f32 %v972, %v957
    %vm974 = vweird.f32 %v211
    %v975 = vadd.s32 %v958, 3
    %v976 = vand.u32 %v975, 3
    %vm977 = vcmp.lt.s32.totalorder %v976, 2
    %vm978 = vcmp.eq.s32.totalorder %v976, 0
    %v979 = vxor.u32 %v973, 2147483648
    %v980 = vsel %vm978, %v965, %v979
    %vm981 = vcmp.eq.s32.totalorder %v976, 2
    %v982 = vxor.u32 %v965, 2147483648
    %v983 = vsel %vm981, %v982, %v973
    %v984 = vsel %vm977, %v980, %v983
    %v985 = vsel %vm974, nan, %v984
    %v986 = vand.u32 2147483647, %v212
    %vm987 = vcmp.le.f32.partialorder %v986, 0.7853982
    %vm988 = vcmp.lt.s32.totalorder %v212, 0
    %v989 = vand.u32 %v212, 2139095040
    %v990 = vshrl.u32 %v989, 23
    %v991 = vsub.s32 %v990, 127
    %v992 = vand.u32 2147483647, %v212
    %v993 = vand.u32 %v992, 8388607
    %v994 = vor.u32 %v993, 8388608
    %v995 = vsub.s32 0, %v994
    %v996 = vadd.s32 %v991, 1
    %vm997 = vcmp.gt.s32.totalorder %v996, 0
    %v998 = vsel %vm997, %v996, 0
    %v999 = vshrl.u32 %v998, 5
    %v1000 = vand.u32 %v998, 31
    %v1001 = vsub.s32 32, %v1000
    %v1002 = vshrl.u32 683565275, %v1001
    %v1003 = vshll.u32 683565275, %v1000
    %v1004 = vshrl.u32 2475754826, %v1001
    %v1005 = vor.u32 %v1003, %v1004
    %v1006 = vshll.u32 2475754826, %v1000
    %v1007 = vshrl.u32 2131351028, %v1001
    %v1008 = vor.u32 %v1006, %v1007
    %v1009 = vshll.u32 2131351028, %v1000
    %v1010 = vshrl.u32 2102212464, %v1001
    %v1011 = vor.u32 %v1009, %v1010
    %v1012 = vshll.u32 2102212464, %v1000
    %v1013 = vshrl.u32 920167782, %v1001
    %v1014 = vor.u32 %v1012, %v1013
    %v1015 = vshll.u32 920167782, %v1000
    %v1016 = vshrl.u32 1326507024, %v1001
    %v1017 = vor.u32 %v1015, %v1016
    %vm1018 = vcmp.lt.s32.totalorder %v999, 1
    %vm1019 = vcmp.lt.s32.totalorder %v999, 2
    %vm1020 = vcmp.lt.s32.totalorder %v999, 3
    %vm1021 = vcmp.lt.s32.totalorder %v999, 4
    %v1022 = vsel %vm1018, %v1002, %v1005
    %v1023 = vsel %vm1021, %v1011, 2102212464
    %v1024 = vsel %vm1020, %v1008, %v1023
    %v1025 = vsel %vm1019, %v1022, %v1024
    %v1026 = vsel %vm1018, %v1005, %v1008
    %v1027 = vsel %vm1021, %v1014, 920167782
    %v1028 = vsel %vm1020, %v1011, %v1027
    %v1029 = vsel %vm1019, %v1026, %v1028
    %v1030 = vsel %vm1018, %v1008, %v1011
    %v1031 = vsel %vm1021, %v1017, 1326507024
    %v1032 = vsel %vm1020, %v1014, %v1031
    %v1033 = vsel %vm1019, %v1030, %v1032
    %v1034 = vshll.u32 %v994, 8
    %v1035 = vand.u32 %v1034, 65535
    %v1036 = vshrl.u32 %v1034, 16
    %v1037 = vand.u32 %v1033, 65535
    %v1038 = vshrl.u32 %v1033, 16
    %v1039 = vmul.u32 %v1035, %v1037
    %v1040 = vmul.u32 %v1035, %v1038
    %v1041 = vmul.u32 %v1036, %v1037
    %v1042 = vmul.u32 %v1036, %v1038
    %v1043 = vshll.u32 %v1040, 16
    %v1044 = vshrl.u32 %v1040, 16
    %v1045 = vshll.u32 %v1041, 16
    %v1046 = vshrl.u32 %v1041, 16
    %vm1047 = vc.u32 %v1039, %v1043
    %v1048 = vsel %vm1047, 1, 0
    %v1049 = vadd.s32 %v1039, %v1043
    %v1050 = vadd.s32 %v1042, %v1048
    %vm1051 = vc.u32 %v1049, %v1045
    %v1052 = vsel %vm1051, 1, 0
    %v1053 = vadd.s32 %v1049, %v1045
    %v1054 = vadd.s32 %v1050, %v1052
    %v1055 = vadd.s32 %v1054, %v1044
    %v1056 = vadd.s32 %v1055, %v1046
    %v1057 = vand.u32 %v1034, 65535
    %v1058 = vshrl.u32 %v1034, 16
    %v1059 = vand.u32 %v1029, 65535
    %v1060 = vshrl.u32 %v1029, 16
    %v1061 = vmul.u32 %v1057, %v1059
    %v1062 = vmul.u32 %v1057, %v1060
    %v1063 = vmul.u32 %v1058, %v1059
    %v1064 = vmul.u32 %v1058, %v1060
    %v1065 = vshll.u32 %v1062, 16
    %v1066 = vshrl.u32 %v1062, 16
    %v1067 = vshll.u32 %v1063, 16
    %v1068 = vshrl.u32 %v1063, 16
    %vm1069 = vc.u32 %v1061, %v1065
    %v1070 = vsel %vm1069, 1, 0
    %v1071 = vadd.s32 %v1061, %v1065
    %v1072 = vadd.s32 %v1064, %v1070
    %vm1073 = vc.u32 %v1071, %v1067
    %v1074 = vsel %vm1073, 1, 0
    %v1075 = vadd.s32 %v1071, %v1067
    %v1076 = vadd.s32 %v1072, %v1074
    %v1077 = vadd.s32 %v1076, %v1066
    %v1078 = vadd.s32 %v1077, %v1068
    %v1079 = vmul.u32 %v1034, %v1025
    %v1080 = vadd.s32 %v1056, %v1075
    %vm1081 = vc.u32 %v1056, %v1075
    %v1082 = vadd.s32 %v1078, 1
    %v1083 = vsel %vm1081, %v1082, %v1078
    %v1084 = vadd.s32 %v1079, %v1083
    %v1085 = vadd.s32 %v1084, 536870912
    %v1086 = vshrl.u32 %v1085, 30
    %v1087 = vshll.u32 %v1086, 30
    %v1088 = vsub.s32 %v1084, %v1087
    %vm1089 = vcmp.lt.s32.totalorder %v1088, 0
    %v1090 = vsub.s32 0, %v1088
    %v1091 = vsel %vm1089, %v1090, %v1088
    %v1092 = vclz %v1091
    %v1093 = vsub.s32 %v1092, 2
    %vm1094 = vcmp.gt.s32.totalorder 0, %v1093
    %v1095 = vsel %vm1094, 0, %v1093
    %v1096 = vsub.s32 32, %v1095
    %v1097 = vshll.u32 %v1088, %v1095
    %v1098 = vshrl.u32 %v1080, %v1096
    %v1099 = vor.u32 %v1097, %v1098
    %v1100 = vsub.s32 4294967266, %v1095
    %v1101 = vadd.s32 %v1100, 127
    %v1102 = vshll.u32 %v1101, 23
    %v1103 = vor.u32 4788187, %v1102
    %v1104 = vand.u32 2147483647, %v1103
    %v1106 = vcvt.s32.f32 %v1099
    %v1107 = vmul.f32 %v1106, %v1104
    %v1108 = vxor.u32 %v1107, 2147483648
    %v1109 = vsel %vm988, %v1108, %v1107
    %v1110 = vsub.s32 4, %v1086
    %v1111 = vsel %vm988, %v1110, %v1086
    %v1112 = vsel %vm987, %v212, %v1109
    %v1113 = vsel %vm987, 0, %v1111
    %v1114 = vmul.f32 %v1112, %v1112
    %v1115 = vmul.f32 %v1114, -0.001358992
    %v1116 = vadd.f32 %v1115, 0.041655596
    %v1117 = vmul.f32 %v1114, %v1116
    %v1118 = vadd.f32 %v1117, -0.4999988
    %v1119 = vmul.f32 %v1114, %v1118
    %v1120 = vadd.f32 1.0, %v1119
    %v1121 = vmul.f32 %v1112, %v1112
    %v1122 = vmul.f32 %v1121, -0.00019511016
    %v1123 = vadd.f32 %v1122, 0.008332121
    %v1124 = vmul.f32 %v1121, %v1123
    %v1125 = vadd.f32 %v1124, -0.16666654
    %v1126 = vmul.f32 %v1121, %v1125
    %v1127 = vadd.f32 %v1126, 1.0
    %v1128 = vmul.f32 %v1127, %v1112
    %vm1129 = vweird.f32 %v212
    %v1130 = vadd.s32 %v1113, 3
    %v1131 = vand.u32 %v1130, 3
    %vm1132 = vcmp.lt.s32.totalorder %v1131, 2
    %vm1133 = vcmp.eq.s32.totalorder %v1131, 0
    %v1134 = vxor.u32 %v1128, 2147483648
    %v1135 = vsel %vm1133, %v1120, %v1134
    %vm1136 = vcmp.eq.s32.totalorder %v1131, 2
    %v1137 = vxor.u32 %v1120, 2147483648
    %v1138 = vsel %vm1136, %v1137, %v1128
    %v1139 = vsel %vm1132, %v1135, %v1138
    %v1140 = vsel %vm1129, nan, %v1139
    %v1141 = vand.u32 2147483647, %v213
    %vm1142 = vcmp.le.f32.partialorder %v1141, 0.7853982
    %vm1143 = vcmp.lt.s32.totalorder %v213, 0
    %v1144 = vand.u32 %v213, 2139095040
    %v1145 = vshrl.u32 %v1144, 23
    %v1146 = vsub.s32 %v1145, 127
    %v1147 = vand.u32 2147483647, %v213
    %v1148 = vand.u32 %v1147, 8388607
    %v1149 = vor.u32 %v1148, 8388608
    %v1150 = vsub.s32 0, %v1149
    %v1151 = vadd.s32 %v1146, 1
    %vm1152 = vcmp.gt.s32.totalorder %v1151, 0
    %v1153 = vsel %vm1152, %v1151, 0
    %v1154 = vshrl.u32 %v1153, 5
    %v1155 = vand.u32 %v1153, 31
    %v1156 = vsub.s32 32, %v1155
    %v1157 = vshrl.u32 683565275, %v1156
    %v1158 = vshll.u32 683565275, %v1155
    %v1159 = vshrl.u32 2475754826, %v1156
    %v1160 = vor.u32 %v1158, %v1159
    %v1161 = vshll.u32 2475754826, %v1155
    %v1162 = vshrl.u32 2131351028, %v1156
    %v1163 = vor.u32 %v1161, %v1162
    %v1164 = vshll.u32 2131351028, %v1155
    %v1165 = vshrl.u32 2102212464, %v1156
    %v1166 = vor.u32 %v1164, %v1165
    %v1167 = vshll.u32 2102212464, %v1155
    %v1168 = vshrl.u32 920167782, %v1156
    %v1169 = vor.u32 %v1167, %v1168
    %v1170 = vshll.u32 920167782, %v1155
    %v1171 = vshrl.u32 1326507024, %v1156
    %v1172 = vor.u32 %v1170, %v1171
    %vm1173 = vcmp.lt.s32.totalorder %v1154, 1
    %vm1174 = vcmp.lt.s32.totalorder %v1154, 2
    %vm1175 = vcmp.lt.s32.totalorder %v1154, 3
    %vm1176 = vcmp.lt.s32.totalorder %v1154, 4
    %v1177 = vsel %vm1173, %v1157, %v1160
    %v1178 = vsel %vm1176, %v1166, 2102212464
    %v1179 = vsel %vm1175, %v1163, %v1178
    %v1180 = vsel %vm1174, %v1177, %v1179
    %v1181 = vsel %vm1173, %v1160, %v1163
    %v1182 = vsel %vm1176, %v1169, 920167782
    %v1183 = vsel %vm1175, %v1166, %v1182
    %v1184 = vsel %vm1174, %v1181, %v1183
    %v1185 = vsel %vm1173, %v1163, %v1166
    %v1186 = vsel %vm1176, %v1172, 1326507024
    %v1187 = vsel %vm1175, %v1169, %v1186
    %v1188 = vsel %vm1174, %v1185, %v1187
    %v1189 = vshll.u32 %v1149, 8
    %v1190 = vand.u32 %v1189, 65535
    %v1191 = vshrl.u32 %v1189, 16
    %v1192 = vand.u32 %v1188, 65535
    %v1193 = vshrl.u32 %v1188, 16
    %v1194 = vmul.u32 %v1190, %v1192
    %v1195 = vmul.u32 %v1190, %v1193
    %v1196 = vmul.u32 %v1191, %v1192
    %v1197 = vmul.u32 %v1191, %v1193
    %v1198 = vshll.u32 %v1195, 16
    %v1199 = vshrl.u32 %v1195, 16
    %v1200 = vshll.u32 %v1196, 16
    %v1201 = vshrl.u32 %v1196, 16
    %vm1202 = vc.u32 %v1194, %v1198
    %v1203 = vsel %vm1202, 1, 0
    %v1204 = vadd.s32 %v1194, %v1198
    %v1205 = vadd.s32 %v1197, %v1203
    %vm1206 = vc.u32 %v1204, %v1200
    %v1207 = vsel %vm1206, 1, 0
    %v1208 = vadd.s32 %v1204, %v1200
    %v1209 = vadd.s32 %v1205, %v1207
    %v1210 = vadd.s32 %v1209, %v1199
    %v1211 = vadd.s32 %v1210, %v1201
    %v1212 = vand.u32 %v1189, 65535
    %v1213 = vshrl.u32 %v1189, 16
    %v1214 = vand.u32 %v1184, 65535
    %v1215 = vshrl.u32 %v1184, 16
    %v1216 = vmul.u32 %v1212, %v1214
    %v1217 = vmul.u32 %v1212, %v1215
    %v1218 = vmul.u32 %v1213, %v1214
    %v1219 = vmul.u32 %v1213, %v1215
    %v1220 = vshll.u32 %v1217, 16
    %v1221 = vshrl.u32 %v1217, 16
    %v1222 = vshll.u32 %v1218, 16
    %v1223 = vshrl.u32 %v1218, 16
    %vm1224 = vc.u32 %v1216, %v1220
    %v1225 = vsel %vm1224, 1, 0
    %v1226 = vadd.s32 %v1216, %v1220
    %v1227 = vadd.s32 %v1219, %v1225
    %vm1228 = vc.u32 %v1226, %v1222
    %v1229 = vsel %vm1228, 1, 0
    %v1230 = vadd.s32 %v1226, %v1222
    %v1231 = vadd.s32 %v1227, %v1229
    %v1232 = vadd.s32 %v1231, %v1221
    %v1233 = vadd.s32 %v1232, %v1223
    %v1234 = vmul.u32 %v1189, %v1180
    %v1235 = vadd.s32 %v1211, %v1230
    %vm1236 = vc.u32 %v1211, %v1230
    %v1237 = vadd.s32 %v1233, 1
    %v1238 = vsel %vm1236, %v1237, %v1233
    %v1239 = vadd.s32 %v1234, %v1238
    %v1240 = vadd.s32 %v1239, 536870912
    %v1241 = vshrl.u32 %v1240, 30
    %v1242 = vshll.u32 %v1241, 30
    %v1243 = vsub.s32 %v1239, %v1242
    %vm1244 = vcmp.lt.s32.totalorder %v1243, 0
    %v1245 = vsub.s32 0, %v1243
    %v1246 = vsel %vm1244, %v1245, %v1243
    %v1247 = vclz %v1246
    %v1248 = vsub.s32 %v1247, 2
    %vm1249 = vcmp.gt.s32.totalorder 0, %v1248
    %v1250 = vsel %vm1249, 0, %v1248
    %v1251 = vsub.s32 32, %v1250
    %v1252 = vshll.u32 %v1243, %v1250
    %v1253 = vshrl.u32 %v1235, %v1251
    %v1254 = vor.u32 %v1252, %v1253
    %v1255 = vsub.s32 4294967266, %v1250
    %v1256 = vadd.s32 %v1255, 127
    %v1257 = vshll.u32 %v1256, 23
    %v1258 = vor.u32 4788187, %v1257
    %v1259 = vand.u32 2147483647, %v1258
    %v1261 = vcvt.s32.f32 %v1254
    %v1262 = vmul.f32 %v1261, %v1259
    %v1263 = vxor.u32 %v1262, 2147483648
    %v1264 = vsel %vm1143, %v1263, %v1262
    %v1265 = vsub.s32 4, %v1241
    %v1266 = vsel %vm1143, %v1265, %v1241
    %v1267 = vsel %vm1142, %v213, %v1264
    %v1268 = vsel %vm1142, 0, %v1266
    %v1269 = vmul.f32 %v1267, %v1267
    %v1270 = vmul.f32 %v1269, -0.001358992
    %v1271 = vadd.f32 %v1270, 0.041655596
    %v1272 = vmul.f32 %v1269, %v1271
    %v1273 = vadd.f32 %v1272, -0.4999988
    %v1274 = vmul.f32 %v1269, %v1273
    %v1275 = vadd.f32 1.0, %v1274
    %v1276 = vmul.f32 %v1267, %v1267
    %v1277 = vmul.f32 %v1276, -0.00019511016
    %v1278 = vadd.f32 %v1277, 0.008332121
    %v1279 = vmul.f32 %v1276, %v1278
    %v1280 = vadd.f32 %v1279, -0.16666654
    %v1281 = vmul.f32 %v1276, %v1280
    %v1282 = vadd.f32 %v1281, 1.0
    %v1283 = vmul.f32 %v1282, %v1267
    %vm1284 = vweird.f32 %v213
    %v1285 = vadd.s32 %v1268, 3
    %v1286 = vand.u32 %v1285, 3
    %vm1287 = vcmp.lt.s32.totalorder %v1286, 2
    %vm1288 = vcmp.eq.s32.totalorder %v1286, 0
    %v1289 = vxor.u32 %v1283, 2147483648
    %v1290 = vsel %vm1288, %v1275, %v1289
    %vm1291 = vcmp.eq.s32.totalorder %v1286, 2
    %v1292 = vxor.u32 %v1275, 2147483648
    %v1293 = vsel %vm1291, %v1292, %v1283
    %v1294 = vsel %vm1287, %v1290, %v1293
    %v1295 = vsel %vm1284, nan, %v1294
    %v1296 = vand.u32 2147483647, %v214
    %vm1297 = vcmp.le.f32.partialorder %v1296, 0.7853982
    %vm1298 = vcmp.lt.s32.totalorder %v214, 0
    %v1299 = vand.u32 %v214, 2139095040
    %v1300 = vshrl.u32 %v1299, 23
    %v1301 = vsub.s32 %v1300, 127
    %v1302 = vand.u32 2147483647, %v214
    %v1303 = vand.u32 %v1302, 8388607
    %v1304 = vor.u32 %v1303, 8388608
    %v1305 = vsub.s32 0, %v1304
    %v1306 = vadd.s32 %v1301, 1
    %vm1307 = vcmp.gt.s32.totalorder %v1306, 0
    %v1308 = vsel %vm1307, %v1306, 0
    %v1309 = vshrl.u32 %v1308, 5
    %v1310 = vand.u32 %v1308, 31
    %v1311 = vsub.s32 32, %v1310
    %v1312 = vshrl.u32 683565275, %v1311
    %v1313 = vshll.u32 683565275, %v1310
    %v1314 = vshrl.u32 2475754826, %v1311
    %v1315 = vor.u32 %v1313, %v1314
    %v1316 = vshll.u32 2475754826, %v1310
    %v1317 = vshrl.u32 2131351028, %v1311
    %v1318 = vor.u32 %v1316, %v1317
    %v1319 = vshll.u32 2131351028, %v1310
    %v1320 = vshrl.u32 2102212464, %v1311
    %v1321 = vor.u32 %v1319, %v1320
    %v1322 = vshll.u32 2102212464, %v1310
    %v1323 = vshrl.u32 920167782, %v1311
    %v1324 = vor.u32 %v1322, %v1323
    %v1325 = vshll.u32 920167782, %v1310
    %v1326 = vshrl.u32 1326507024, %v1311
    %v1327 = vor.u32 %v1325, %v1326
    %vm1328 = vcmp.lt.s32.totalorder %v1309, 1
    %vm1329 = vcmp.lt.s32.totalorder %v1309, 2
    %vm1330 = vcmp.lt.s32.totalorder %v1309, 3
    %vm1331 = vcmp.lt.s32.totalorder %v1309, 4
    %v1332 = vsel %vm1328, %v1312, %v1315
    %v1333 = vsel %vm1331, %v1321, 2102212464
    %v1334 = vsel %vm1330, %v1318, %v1333
    %v1335 = vsel %vm1329, %v1332, %v1334
    %v1336 = vsel %vm1328, %v1315, %v1318
    %v1337 = vsel %vm1331, %v1324, 920167782
    %v1338 = vsel %vm1330, %v1321, %v1337
    %v1339 = vsel %vm1329, %v1336, %v1338
    %v1340 = vsel %vm1328, %v1318, %v1321
    %v1341 = vsel %vm1331, %v1327, 1326507024
    %v1342 = vsel %vm1330, %v1324, %v1341
    %v1343 = vsel %vm1329, %v1340, %v1342
    %v1344 = vshll.u32 %v1304, 8
    %v1345 = vand.u32 %v1344, 65535
    %v1346 = vshrl.u32 %v1344, 16
    %v1347 = vand.u32 %v1343, 65535
    %v1348 = vshrl.u32 %v1343, 16
    %v1349 = vmul.u32 %v1345, %v1347
    %v1350 = vmul.u32 %v1345, %v1348
    %v1351 = vmul.u32 %v1346, %v1347
    %v1352 = vmul.u32 %v1346, %v1348
    %v1353 = vshll.u32 %v1350, 16
    %v1354 = vshrl.u32 %v1350, 16
    %v1355 = vshll.u32 %v1351, 16
    %v1356 = vshrl.u32 %v1351, 16
    %vm1357 = vc.u32 %v1349, %v1353
    %v1358 = vsel %vm1357, 1, 0
    %v1359 = vadd.s32 %v1349, %v1353
    %v1360 = vadd.s32 %v1352, %v1358
    %vm1361 = vc.u32 %v1359, %v1355
    %v1362 = vsel %vm1361, 1, 0
    %v1363 = vadd.s32 %v1359, %v1355
    %v1364 = vadd.s32 %v1360, %v1362
    %v1365 = vadd.s32 %v1364, %v1354
    %v1366 = vadd.s32 %v1365, %v1356
    %v1367 = vand.u32 %v1344, 65535
    %v1368 = vshrl.u32 %v1344, 16
    %v1369 = vand.u32 %v1339, 65535
    %v1370 = vshrl.u32 %v1339, 16
    %v1371 = vmul.u32 %v1367, %v1369
    %v1372 = vmul.u32 %v1367, %v1370
    %v1373 = vmul.u32 %v1368, %v1369
    %v1374 = vmul.u32 %v1368, %v1370
    %v1375 = vshll.u32 %v1372, 16
    %v1376 = vshrl.u32 %v1372, 16
    %v1377 = vshll.u32 %v1373, 16
    %v1378 = vshrl.u32 %v1373, 16
    %vm1379 = vc.u32 %v1371, %v1375
    %v1380 = vsel %vm1379, 1, 0
    %v1381 = vadd.s32 %v1371, %v1375
    %v1382 = vadd.s32 %v1374, %v1380
    %vm1383 = vc.u32 %v1381, %v1377
    %v1384 = vsel %vm1383, 1, 0
    %v1385 = vadd.s32 %v1381, %v1377
    %v1386 = vadd.s32 %v1382, %v1384
    %v1387 = vadd.s32 %v1386, %v1376
    %v1388 = vadd.s32 %v1387, %v1378
    %v1389 = vmul.u32 %v1344, %v1335
    %v1390 = vadd.s32 %v1366, %v1385
    %vm1391 = vc.u32 %v1366, %v1385
    %v1392 = vadd.s32 %v1388, 1
    %v1393 = vsel %vm1391, %v1392, %v1388
    %v1394 = vadd.s32 %v1389, %v1393
    %v1395 = vadd.s32 %v1394, 536870912
    %v1396 = vshrl.u32 %v1395, 30
    %v1397 = vshll.u32 %v1396, 30
    %v1398 = vsub.s32 %v1394, %v1397
    %vm1399 = vcmp.lt.s32.totalorder %v1398, 0
    %v1400 = vsub.s32 0, %v1398
    %v1401 = vsel %vm1399, %v1400, %v1398
    %v1402 = vclz %v1401
    %v1403 = vsub.s32 %v1402, 2
    %vm1404 = vcmp.gt.s32.totalorder 0, %v1403
    %v1405 = vsel %vm1404, 0, %v1403
    %v1406 = vsub.s32 32, %v1405
    %v1407 = vshll.u32 %v1398, %v1405
    %v1408 = vshrl.u32 %v1390, %v1406
    %v1409 = vor.u32 %v1407, %v1408
    %v1410 = vsub.s32 4294967266, %v1405
    %v1411 = vadd.s32 %v1410, 127
    %v1412 = vshll.u32 %v1411, 23
    %v1413 = vor.u32 4788187, %v1412
    %v1414 = vand.u32 2147483647, %v1413
    %v1416 = vcvt.s32.f32 %v1409
    %v1417 = vmul.f32 %v1416, %v1414
    %v1418 = vxor.u32 %v1417, 2147483648
    %v1419 = vsel %vm1298, %v1418, %v1417
    %v1420 = vsub.s32 4, %v1396
    %v1421 = vsel %vm1298, %v1420, %v1396
    %v1422 = vsel %vm1297, %v214, %v1419
    %v1423 = vsel %vm1297, 0, %v1421
    %v1424 = vmul.f32 %v1422, %v1422
    %v1425 = vmul.f32 %v1424, -0.001358992
    %v1426 = vadd.f32 %v1425, 0.041655596
    %v1427 = vmul.f32 %v1424, %v1426
    %v1428 = vadd.f32 %v1427, -0.4999988
    %v1429 = vmul.f32 %v1424, %v1428
    %v1430 = vadd.f32 1.0, %v1429
    %v1431 = vmul.f32 %v1422, %v1422
    %v1432 = vmul.f32 %v1431, -0.00019511016
    %v1433 = vadd.f32 %v1432, 0.008332121
    %v1434 = vmul.f32 %v1431, %v1433
    %v1435 = vadd.f32 %v1434, -0.16666654
    %v1436 = vmul.f32 %v1431, %v1435
    %v1437 = vadd.f32 %v1436, 1.0
    %v1438 = vmul.f32 %v1437, %v1422
    %vm1439 = vweird.f32 %v214
    %v1440 = vadd.s32 %v1423, 3
    %v1441 = vand.u32 %v1440, 3
    %vm1442 = vcmp.lt.s32.totalorder %v1441, 2
    %vm1443 = vcmp.eq.s32.totalorder %v1441, 0
    %v1444 = vxor.u32 %v1438, 2147483648
    %v1445 = vsel %vm1443, %v1430, %v1444
    %vm1446 = vcmp.eq.s32.totalorder %v1441, 2
    %v1447 = vxor.u32 %v1430, 2147483648
    %v1448 = vsel %vm1446, %v1447, %v1438
    %v1449 = vsel %vm1442, %v1445, %v1448
    %v1450 = vsel %vm1439, nan, %v1449
    %v1451 = vld [vmem:[#allocation7] sm:$0xff]
    %v1452 = vld [vmem:[#allocation7 + $0x8] sm:$0xff]
    %v1453 = vld [vmem:[#allocation7 + $0x10] sm:$0xff]
    %v1454 = vld [vmem:[#allocation7 + $0x18] sm:$0xff]
    %v1455 = vld [vmem:[#allocation8] sm:$0xff]
    %v1456 = vld [vmem:[#allocation8 + $0x8] sm:$0xff]
    %v1457 = vld [vmem:[#allocation8 + $0x10] sm:$0xff]
    %v1458 = vld [vmem:[#allocation8 + $0x18] sm:$0xff]
    %v1459 = vsub.f32 0.0, %v1455
    %v1460 = vsub.f32 0.0, %v1456
    %v1461 = vsub.f32 0.0, %v1457
    %v1462 = vsub.f32 0.0, %v1458
    %v1463 = vmul.f32 %v1459, %v209
    %v1464 = vmul.f32 %v1460, %v209
    %v1465 = vmul.f32 %v1461, %v209
    %v1466 = vmul.f32 %v1462, %v209
    %v1467 = vmul.f32 %v368, %v1451
    %v1468 = vmul.f32 %v522, %v1452
    %v1469 = vmul.f32 %v676, %v1453
    %v1470 = vmul.f32 %v830, %v1454
    %v1471 = vmul.f32 %v985, %v1463
    %v1472 = vmul.f32 %v1140, %v1464
    %v1473 = vmul.f32 %v1295, %v1465
    %v1474 = vmul.f32 %v1450, %v1466
    %v1475 = vsub.f32 %v1467, %v1471
    %v1476 = vsub.f32 %v1468, %v1472
    %v1477 = vsub.f32 %v1469, %v1473
    %v1478 = vsub.f32 %v1470, %v1474
    %v1479 = vmul.f32 %v368, %v1463
    %v1480 = vmul.f32 %v522, %v1464
    %v1481 = vmul.f32 %v676, %v1465
    %v1482 = vmul.f32 %v830, %v1466
    %v1483 = vmul.f32 %v985, %v1451
    %v1484 = vmul.f32 %v1140, %v1452
    %v1485 = vmul.f32 %v1295, %v1453
    %v1486 = vmul.f32 %v1450, %v1454
    %v1487 = vadd.f32 %v1479, %v1483
    %v1488 = vadd.f32 %v1480, %v1484
    %v1489 = vadd.f32 %v1481, %v1485
    %v1490 = vadd.f32 %v1482, %v1486
    %v1491 = vld [vmem:[#allocation11] sm:$0xff]
    %v1492 = vld [vmem:[#allocation11 + $0x8] sm:$0xff]
    %v1493 = vld [vmem:[#allocation11 + $0x10] sm:$0xff]
    %v1494 = vld [vmem:[#allocation11 + $0x18] sm:$0xff]
    %v1495 = vld [vmem:[#allocation13] sm:$0xff]
    %v1496 = vld [vmem:[#allocation13 + $0x8] sm:$0xff]
    %v1497 = vld [vmem:[#allocation13 + $0x10] sm:$0xff]
    %v1498 = vld [vmem:[#allocation13 + $0x18] sm:$0xff]
    %vm1499 = vcmask 261120
    %v1501 = vsel %vm1499, %v1491, 0
    %v1504 = vsel %vm1499, %v1492, 0
    %v1507 = vsel %vm1499, %v1493, 0
    %v1510 = vsel %vm1499, %v1494, 0
    %1512 = vmatpush.msra.mxu0 0.0
    %1513 = vmatpush.msra.mxu0 0.0
    %1514 = vmatpush.msra.mxu0 0.0
    %1515 = vmatpush.msra.mxu0 0.0
    %1516 = vmatpush.msra.mxu0 0.0
    %1517 = vmatpush.msra.mxu0 0.0
    %1518 = vmatpush.msra.mxu0 0.0
    %1519 = vmatpush.msra.mxu0 0.0
    %1520 = vmatpush.msra.mxu0 0.0
    %1521 = vmatpush.msra.mxu0 0.0
    %1522 = vmatpush.msra.mxu0 0.0
    %1523 = vmatpush.msra.mxu0 0.0
    %1524 = vmatpush.msra.mxu0 %v1478
    %1525 = vmatpush.msra.mxu0 %v1477
    %1526 = vmatpush.msra.mxu0 %v1476
    %1527 = vmatpush.msra.mxu0 %v1475
    %1528 = vmatmul.f32.gmra.mxu0 %v1501
    %v1529 = vpop.f32.mrf.mxu0
    %v1530 = vadd.f32 0.0, %v1529
    %1531 = vmatmul.f32.gmra.mxu0 %v1504
    %v1532 = vpop.f32.mrf.mxu0
    %v1533 = vadd.f32 0.0, %v1532
    %1534 = vmatmul.f32.gmra.mxu0 %v1507
    %v1535 = vpop.f32.mrf.mxu0
    %v1536 = vadd.f32 0.0, %v1535
    %1537 = vmatmul.f32.gmra.mxu0 %v1510
    %v1538 = vpop.f32.mrf.mxu0
    %v1539 = vadd.f32 0.0, %v1538
    %1540 = vdwg.mxu0
    %v1542 = vsel %vm1499, %v1495, 0
    %v1545 = vsel %vm1499, %v1496, 0
    %v1548 = vsel %vm1499, %v1497, 0
    %v1551 = vsel %vm1499, %v1498, 0
    %1553 = vmatpush.msra.mxu0 0.0
    %1554 = vmatpush.msra.mxu0 0.0
    %1555 = vmatpush.msra.mxu0 0.0
    %1556 = vmatpush.msra.mxu0 0.0
    %1557 = vmatpush.msra.mxu0 0.0
    %1558 = vmatpush.msra.mxu0 0.0
    %1559 = vmatpush.msra.mxu0 0.0
    %1560 = vmatpush.msra.mxu0 0.0
    %1561 = vmatpush.msra.mxu0 0.0
    %1562 = vmatpush.msra.mxu0 0.0
    %1563 = vmatpush.msra.mxu0 0.0
    %1564 = vmatpush.msra.mxu0 0.0
    %1565 = vmatpush.msra.mxu0 %v1490
    %1566 = vmatpush.msra.mxu0 %v1489
    %1567 = vmatpush.msra.mxu0 %v1488
    %1568 = vmatpush.msra.mxu0 %v1487
    %1569 = vmatmul.f32.gmra.mxu0 %v1542
    %v1570 = vpop.f32.mrf.mxu0
    %v1571 = vadd.f32 0.0, %v1570
    %1572 = vmatmul.f32.gmra.mxu0 %v1545
    %v1573 = vpop.f32.mrf.mxu0
    %v1574 = vadd.f32 0.0, %v1573
    %1575 = vmatmul.f32.gmra.mxu0 %v1548
    %v1576 = vpop.f32.mrf.mxu0
    %v1577 = vadd.f32 0.0, %v1576
    %1578 = vmatmul.f32.gmra.mxu0 %v1551
    %v1579 = vpop.f32.mrf.mxu0
    %v1580 = vadd.f32 0.0, %v1579
    %1581 = vdwg.mxu0
    %v1582 = vadd.f32 %v1491, %v1495
    %v1583 = vadd.f32 %v1492, %v1496
    %v1584 = vadd.f32 %v1493, %v1497
    %v1585 = vadd.f32 %v1494, %v1498
    %v1586 = vadd.f32 %v1475, %v1487
    %v1587 = vadd.f32 %v1476, %v1488
    %v1588 = vadd.f32 %v1477, %v1489
    %v1589 = vadd.f32 %v1478, %v1490
    %v1591 = vsel %vm1499, %v1582, 0
    %v1594 = vsel %vm1499, %v1583, 0
    %v1597 = vsel %vm1499, %v1584, 0
    %v1600 = vsel %vm1499, %v1585, 0
    %1602 = vmatpush.msra.mxu0 0.0
    %1603 = vmatpush.msra.mxu0 0.0
    %1604 = vmatpush.msra.mxu0 0.0
    %1605 = vmatpush.msra.mxu0 0.0
    %1606 = vmatpush.msra.mxu0 0.0
    %1607 = vmatpush.msra.mxu0 0.0
    %1608 = vmatpush.msra.mxu0 0.0
    %1609 = vmatpush.msra.mxu0 0.0
    %1610 = vmatpush.msra.mxu0 0.0
    %1611 = vmatpush.msra.mxu0 0.0
    %1612 = vmatpush.msra.mxu0 0.0
    %1613 = vmatpush.msra.mxu0 0.0
    %1614 = vmatpush.msra.mxu0 %v1589
    %1615 = vmatpush.msra.mxu0 %v1588
    %1616 = vmatpush.msra.mxu0 %v1587
    %1617 = vmatpush.msra.mxu0 %v1586
    %1618 = vmatmul.f32.gmra.mxu0 %v1591
    %v1619 = vpop.f32.mrf.mxu0
    %v1620 = vadd.f32 0.0, %v1619
    %1621 = vmatmul.f32.gmra.mxu0 %v1594
    %v1622 = vpop.f32.mrf.mxu0
    %v1623 = vadd.f32 0.0, %v1622
    %1624 = vmatmul.f32.gmra.mxu0 %v1597
    %v1625 = vpop.f32.mrf.mxu0
    %v1626 = vadd.f32 0.0, %v1625
    %1627 = vmatmul.f32.gmra.mxu0 %v1600
    %v1628 = vpop.f32.mrf.mxu0
    %v1629 = vadd.f32 0.0, %v1628
    %1630 = vdwg.mxu0
    %v1631 = vsub.f32 %v1530, %v1571
    %v1632 = vsub.f32 %v1533, %v1574
    %v1633 = vsub.f32 %v1536, %v1577
    %v1634 = vsub.f32 %v1539, %v1580
    %v1635 = vsub.f32 %v1620, %v1530
    %v1636 = vsub.f32 %v1623, %v1533
    %v1637 = vsub.f32 %v1626, %v1536
    %v1638 = vsub.f32 %v1629, %v1539
    %v1639 = vsub.f32 %v1635, %v1571
    %v1640 = vsub.f32 %v1636, %v1574
    %v1641 = vsub.f32 %v1637, %v1577
    %v1642 = vsub.f32 %v1638, %v1580
    %v1643 = vld [vmem:[%s12] sm:$0xff]
    %v1644 = vld [vmem:[%s12 + $0x8] sm:$0xff]
    %v1645 = vld [vmem:[%s12 + $0x10] sm:$0xff]
    %v1646 = vld [vmem:[%s12 + $0x18] sm:$0xff]
    %v1647 = vld [vmem:[%s12 + $0x20] sm:$0xff]
    %v1648 = vld [vmem:[%s12 + $0x28] sm:$0xff]
    %v1649 = vld [vmem:[%s12 + $0x30] sm:$0xff]
    %v1650 = vld [vmem:[%s12 + $0x38] sm:$0xff]
    %v1651 = vld [vmem:[%s12 + $0x40] sm:$0xff]
    %v1652 = vld [vmem:[%s12 + $0x48] sm:$0xff]
    %v1653 = vld [vmem:[%s12 + $0x50] sm:$0xff]
    %v1654 = vld [vmem:[%s12 + $0x58] sm:$0xff]
    %v1655 = vld [vmem:[%s12 + $0x60] sm:$0xff]
    %v1656 = vld [vmem:[%s12 + $0x68] sm:$0xff]
    %v1657 = vld [vmem:[%s12 + $0x70] sm:$0xff]
    %v1658 = vld [vmem:[%s12 + $0x78] sm:$0xff]
    %v1659 = vld [vmem:[%s13] sm:$0xff]
    %v1660 = vld [vmem:[%s13 + $0x8] sm:$0xff]
    %v1661 = vld [vmem:[%s13 + $0x10] sm:$0xff]
    %v1662 = vld [vmem:[%s13 + $0x18] sm:$0xff]
    %v1663 = vld [vmem:[%s13 + $0x20] sm:$0xff]
    %v1664 = vld [vmem:[%s13 + $0x28] sm:$0xff]
    %v1665 = vld [vmem:[%s13 + $0x30] sm:$0xff]
    %v1666 = vld [vmem:[%s13 + $0x38] sm:$0xff]
    %v1667 = vld [vmem:[%s13 + $0x40] sm:$0xff]
    %v1668 = vld [vmem:[%s13 + $0x48] sm:$0xff]
    %v1669 = vld [vmem:[%s13 + $0x50] sm:$0xff]
    %v1670 = vld [vmem:[%s13 + $0x58] sm:$0xff]
    %v1671 = vld [vmem:[%s13 + $0x60] sm:$0xff]
    %v1672 = vld [vmem:[%s13 + $0x68] sm:$0xff]
    %v1673 = vld [vmem:[%s13 + $0x70] sm:$0xff]
    %v1674 = vld [vmem:[%s13 + $0x78] sm:$0xff]
    %1675 = vmatpush.msra.mxu0 %v1658
    %1676 = vmatpush.msra.mxu0 %v1657
    %1677 = vmatpush.msra.mxu0 %v1656
    %1678 = vmatpush.msra.mxu0 %v1655
    %1679 = vmatpush.msra.mxu0 %v1654
    %1680 = vmatpush.msra.mxu0 %v1653
    %1681 = vmatpush.msra.mxu0 %v1652
    %1682 = vmatpush.msra.mxu0 %v1651
    %1683 = vmatpush.msra.mxu0 %v1650
    %1684 = vmatpush.msra.mxu0 %v1649
    %1685 = vmatpush.msra.mxu0 %v1648
    %1686 = vmatpush.msra.mxu0 %v1647
    %1687 = vmatpush.msra.mxu0 %v1646
    %1688 = vmatpush.msra.mxu0 %v1645
    %1689 = vmatpush.msra.mxu0 %v1644
    %1690 = vmatpush.msra.mxu0 %v1643
    %1691 = vmatmul.f32.gmra.mxu0 %v1631
    %v1692 = vpop.f32.mrf.mxu0
    %v1693 = vadd.f32 0.0, %v1692
    %1694 = vmatmul.f32.gmra.mxu0 %v1632
    %v1695 = vpop.f32.mrf.mxu0
    %v1696 = vadd.f32 0.0, %v1695
    %1697 = vmatmul.f32.gmra.mxu0 %v1633
    %v1698 = vpop.f32.mrf.mxu0
    %v1699 = vadd.f32 0.0, %v1698
    %1700 = vmatmul.f32.gmra.mxu0 %v1634
    %v1701 = vpop.f32.mrf.mxu0
    %v1702 = vadd.f32 0.0, %v1701
    %1703 = vdwg.mxu0
    %1704 = vmatpush.msra.mxu0 %v1674
    %1705 = vmatpush.msra.mxu0 %v1673
    %1706 = vmatpush.msra.mxu0 %v1672
    %1707 = vmatpush.msra.mxu0 %v1671
    %1708 = vmatpush.msra.mxu0 %v1670
    %1709 = vmatpush.msra.mxu0 %v1669
    %1710 = vmatpush.msra.mxu0 %v1668
    %1711 = vmatpush.msra.mxu0 %v1667
    %1712 = vmatpush.msra.mxu0 %v1666
    %1713 = vmatpush.msra.mxu0 %v1665
    %1714 = vmatpush.msra.mxu0 %v1664
    %1715 = vmatpush.msra.mxu0 %v1663
    %1716 = vmatpush.msra.mxu0 %v1662
    %1717 = vmatpush.msra.mxu0 %v1661
    %1718 = vmatpush.msra.mxu0 %v1660
    %1719 = vmatpush.msra.mxu0 %v1659
    %1720 = vmatmul.f32.gmra.mxu0 %v1639
    %v1721 = vpop.f32.mrf.mxu0
    %v1722 = vadd.f32 0.0, %v1721
    %1723 = vmatmul.f32.gmra.mxu0 %v1640
    %v1724 = vpop.f32.mrf.mxu0
    %v1725 = vadd.f32 0.0, %v1724
    %1726 = vmatmul.f32.gmra.mxu0 %v1641
    %v1727 = vpop.f32.mrf.mxu0
    %v1728 = vadd.f32 0.0, %v1727
    %1729 = vmatmul.f32.gmra.mxu0 %v1642
    %v1730 = vpop.f32.mrf.mxu0
    %v1731 = vadd.f32 0.0, %v1730
    %1732 = vdwg.mxu0
    %v1733 = vadd.f32 %v1631, %v1639
    %v1734 = vadd.f32 %v1632, %v1640
    %v1735 = vadd.f32 %v1633, %v1641
    %v1736 = vadd.f32 %v1634, %v1642
    %v1737 = vadd.f32 %v1643, %v1659
    %v1738 = vadd.f32 %v1644, %v1660
    %v1739 = vadd.f32 %v1645, %v1661
    %v1740 = vadd.f32 %v1646, %v1662
    %v1741 = vadd.f32 %v1647, %v1663
    %v1742 = vadd.f32 %v1648, %v1664
    %v1743 = vadd.f32 %v1649, %v1665
    %v1744 = vadd.f32 %v1650, %v1666
    %v1745 = vadd.f32 %v1651, %v1667
    %v1746 = vadd.f32 %v1652, %v1668
    %v1747 = vadd.f32 %v1653, %v1669
    %v1748 = vadd.f32 %v1654, %v1670
    %v1749 = vadd.f32 %v1655, %v1671
    %v1750 = vadd.f32 %v1656, %v1672
    %v1751 = vadd.f32 %v1657, %v1673
    %v1752 = vadd.f32 %v1658, %v1674
    %1753 = vmatpush.msra.mxu0 %v1752
    %1754 = vmatpush.msra.mxu0 %v1751
    %1755 = vmatpush.msra.mxu0 %v1750
    %1756 = vmatpush.msra.mxu0 %v1749
    %1757 = vmatpush.msra.mxu0 %v1748
    %1758 = vmatpush.msra.mxu0 %v1747
    %1759 = vmatpush.msra.mxu0 %v1746
    %1760 = vmatpush.msra.mxu0 %v1745
    %1761 = vmatpush.msra.mxu0 %v1744
    %1762 = vmatpush.msra.mxu0 %v1743
    %1763 = vmatpush.msra.mxu0 %v1742
    %1764 = vmatpush.msra.mxu0 %v1741
    %1765 = vmatpush.msra.mxu0 %v1740
    %1766 = vmatpush.msra.mxu0 %v1739
    %1767 = vmatpush.msra.mxu0 %v1738
    %1768 = vmatpush.msra.mxu0 %v1737
    %1769 = vmatmul.f32.gmra.mxu0 %v1733
    %v1770 = vpop.f32.mrf.mxu0
    %v1771 = vadd.f32 0.0, %v1770
    %1772 = vmatmul.f32.gmra.mxu0 %v1734
    %v1773 = vpop.f32.mrf.mxu0
    %v1774 = vadd.f32 0.0, %v1773
    %1775 = vmatmul.f32.gmra.mxu0 %v1735
    %v1776 = vpop.f32.mrf.mxu0
    %v1777 = vadd.f32 0.0, %v1776
    %1778 = vmatmul.f32.gmra.mxu0 %v1736
    %v1779 = vpop.f32.mrf.mxu0
    %v1780 = vadd.f32 0.0, %v1779
    %1781 = vdwg.mxu0
    %v1782 = vsub.f32 %v1693, %v1722
    %v1783 = vsub.f32 %v1696, %v1725
    %v1784 = vsub.f32 %v1699, %v1728
    %v1785 = vsub.f32 %v1702, %v1731
    %v1786 = vsub.f32 %v1771, %v1693
    %v1787 = vsub.f32 %v1774, %v1696
    %v1788 = vsub.f32 %v1777, %v1699
    %v1789 = vsub.f32 %v1780, %v1702
    %v1790 = vsub.f32 %v1786, %v1722
    %v1791 = vsub.f32 %v1787, %v1725
    %v1792 = vsub.f32 %v1788, %v1728
    %v1793 = vsub.f32 %v1789, %v1731
    %v1794 = vld [vmem:[%s6] sm:$0xff]
    %v1795 = vld [vmem:[%s6 + $0x8] sm:$0xff]
    %v1796 = vld [vmem:[%s6 + $0x10] sm:$0xff]
    %v1797 = vld [vmem:[%s6 + $0x18] sm:$0xff]
    %v1798 = vld [vmem:[%s7] sm:$0xff]
    %v1799 = vld [vmem:[%s7 + $0x8] sm:$0xff]
    %v1800 = vld [vmem:[%s7 + $0x10] sm:$0xff]
    %v1801 = vld [vmem:[%s7 + $0x18] sm:$0xff]
    %v1802 = vld [vmem:[#allocation2] sm:$0xff]
    %v1803 = vld [vmem:[#allocation2 + $0x8] sm:$0xff]
    %v1804 = vld [vmem:[#allocation5] sm:$0xff]
    %v1805 = vld [vmem:[#allocation5 + $0x8] sm:$0xff]
    %vm1806 = vcmask 130048
    %v1808 = vsel %vm1806, %v1794, 0
    %v1811 = vsel %vm1806, %v1795, 0
    %v1814 = vsel %vm1806, %v1796, 0
    %v1817 = vsel %vm1806, %v1797, 0
    %1819 = vmatpush.msra.mxu0 0.0
    %1820 = vmatpush.msra.mxu0 0.0
    %1821 = vmatpush.msra.mxu0 0.0
    %1822 = vmatpush.msra.mxu0 0.0
    %1823 = vmatpush.msra.mxu0 0.0
    %1824 = vmatpush.msra.mxu0 0.0
    %1825 = vmatpush.msra.mxu0 0.0
    %1826 = vmatpush.msra.mxu0 0.0
    %1827 = vmatpush.msra.mxu0 0.0
    %1828 = vmatpush.msra.mxu0 0.0
    %1829 = vmatpush.msra.mxu0 0.0
    %1830 = vmatpush.msra.mxu0 0.0
    %1831 = vmatpush.msra.mxu0 0.0
    %1832 = vmatpush.msra.mxu0 0.0
    %1833 = vmatpush.msra.mxu0 %v1803
    %1834 = vmatpush.msra.mxu0 %v1802
    %1835 = vmatmul.f32.gmra.mxu0 %v1808
    %v1836 = vpop.f32.mrf.mxu0
    %v1837 = vadd.f32 0.0, %v1836
    %1838 = vmatmul.f32.gmra.mxu0 %v1811
    %v1839 = vpop.f32.mrf.mxu0
    %v1840 = vadd.f32 0.0, %v1839
    %1841 = vmatmul.f32.gmra.mxu0 %v1814
    %v1842 = vpop.f32.mrf.mxu0
    %v1843 = vadd.f32 0.0, %v1842
    %1844 = vmatmul.f32.gmra.mxu0 %v1817
    %v1845 = vpop.f32.mrf.mxu0
    %v1846 = vadd.f32 0.0, %v1845
    %1847 = vdwg.mxu0
    %v1849 = vsel %vm1806, %v1798, 0
    %v1852 = vsel %vm1806, %v1799, 0
    %v1855 = vsel %vm1806, %v1800, 0
    %v1858 = vsel %vm1806, %v1801, 0
    %1860 = vmatpush.msra.mxu0 0.0
    %1861 = vmatpush.msra.mxu0 0.0
    %1862 = vmatpush.msra.mxu0 0.0
    %1863 = vmatpush.msra.mxu0 0.0
    %1864 = vmatpush.msra.mxu0 0.0
    %1865 = vmatpush.msra.mxu0 0.0
    %1866 = vmatpush.msra.mxu0 0.0
    %1867 = vmatpush.msra.mxu0 0.0
    %1868 = vmatpush.msra.mxu0 0.0
    %1869 = vmatpush.msra.mxu0 0.0
    %1870 = vmatpush.msra.mxu0 0.0
    %1871 = vmatpush.msra.mxu0 0.0
    %1872 = vmatpush.msra.mxu0 0.0
    %1873 = vmatpush.msra.mxu0 0.0
    %1874 = vmatpush.msra.mxu0 %v1805
    %1875 = vmatpush.msra.mxu0 %v1804
    %1876 = vmatmul.f32.gmra.mxu0 %v1849
    %v1877 = vpop.f32.mrf.mxu0
    %v1878 = vadd.f32 0.0, %v1877
    %1879 = vmatmul.f32.gmra.mxu0 %v1852
    %v1880 = vpop.f32.mrf.mxu0
    %v1881 = vadd.f32 0.0, %v1880
    %1882 = vmatmul.f32.gmra.mxu0 %v1855
    %v1883 = vpop.f32.mrf.mxu0
    %v1884 = vadd.f32 0.0, %v1883
    %1885 = vmatmul.f32.gmra.mxu0 %v1858
    %v1886 = vpop.f32.mrf.mxu0
    %v1887 = vadd.f32 0.0, %v1886
    %1888 = vdwg.mxu0
    %v1889 = vadd.f32 %v1794, %v1798
    %v1890 = vadd.f32 %v1795, %v1799
    %v1891 = vadd.f32 %v1796, %v1800
    %v1892 = vadd.f32 %v1797, %v1801
    %v1893 = vadd.f32 %v1802, %v1804
    %v1894 = vadd.f32 %v1803, %v1805
    %v1896 = vsel %vm1806, %v1889, 0
    %v1899 = vsel %vm1806, %v1890, 0
    %v1902 = vsel %vm1806, %v1891, 0
    %v1905 = vsel %vm1806, %v1892, 0
    %1907 = vmatpush.msra.mxu0 0.0
    %1908 = vmatpush.msra.mxu0 0.0
    %1909 = vmatpush.msra.mxu0 0.0
    %1910 = vmatpush.msra.mxu0 0.0
    %1911 = vmatpush.msra.mxu0 0.0
    %1912 = vmatpush.msra.mxu0 0.0
    %1913 = vmatpush.msra.mxu0 0.0
    %1914 = vmatpush.msra.mxu0 0.0
    %1915 = vmatpush.msra.mxu0 0.0
    %1916 = vmatpush.msra.mxu0 0.0
    %1917 = vmatpush.msra.mxu0 0.0
    %1918 = vmatpush.msra.mxu0 0.0
    %1919 = vmatpush.msra.mxu0 0.0
    %1920 = vmatpush.msra.mxu0 0.0
    %1921 = vmatpush.msra.mxu0 %v1894
    %1922 = vmatpush.msra.mxu0 %v1893
    %1923 = vmatmul.f32.gmra.mxu0 %v1896
    %v1924 = vpop.f32.mrf.mxu0
    %v1925 = vadd.f32 0.0, %v1924
    %1926 = vmatmul.f32.gmra.mxu0 %v1899
    %v1927 = vpop.f32.mrf.mxu0
    %v1928 = vadd.f32 0.0, %v1927
    %1929 = vmatmul.f32.gmra.mxu0 %v1902
    %v1930 = vpop.f32.mrf.mxu0
    %v1931 = vadd.f32 0.0, %v1930
    %1932 = vmatmul.f32.gmra.mxu0 %v1905
    %v1933 = vpop.f32.mrf.mxu0
    %v1934 = vadd.f32 0.0, %v1933
    %1935 = vdwg.mxu0
    %v1936 = vsub.f32 %v1837, %v1878
    %v1937 = vsub.f32 %v1840, %v1881
    %v1938 = vsub.f32 %v1843, %v1884
    %v1939 = vsub.f32 %v1846, %v1887
    %v1940 = vsub.f32 %v1925, %v1837
    %v1941 = vsub.f32 %v1928, %v1840
    %v1942 = vsub.f32 %v1931, %v1843
    %v1943 = vsub.f32 %v1934, %v1846
    %v1944 = vsub.f32 %v1940, %v1878
    %v1945 = vsub.f32 %v1941, %v1881
    %v1946 = vsub.f32 %v1942, %v1884
    %v1947 = vsub.f32 %v1943, %v1887
    %v1948 = vld [vmem:[%s8] sm:$0xff]
    %v1949 = vld [vmem:[%s8 + $0x8] sm:$0xff]
    %v1950 = vld [vmem:[%s8 + $0x10] sm:$0xff]
    %v1951 = vld [vmem:[%s8 + $0x18] sm:$0xff]
    %v1952 = vld [vmem:[%s8 + $0x20] sm:$0xff]
    %v1953 = vld [vmem:[%s8 + $0x28] sm:$0xff]
    %v1954 = vld [vmem:[%s8 + $0x30] sm:$0xff]
    %v1955 = vld [vmem:[%s8 + $0x38] sm:$0xff]
    %v1956 = vld [vmem:[#allocation10] sm:$0xff]
    %v1957 = vld [vmem:[#allocation10 + $0x8] sm:$0xff]
    %v1958 = vld [vmem:[#allocation10 + $0x10] sm:$0xff]
    %v1959 = vld [vmem:[#allocation10 + $0x18] sm:$0xff]
    %v1960 = vld [vmem:[#allocation10 + $0x20] sm:$0xff]
    %v1961 = vld [vmem:[#allocation10 + $0x28] sm:$0xff]
    %v1962 = vld [vmem:[#allocation10 + $0x30] sm:$0xff]
    %v1963 = vld [vmem:[#allocation10 + $0x38] sm:$0xff]
    %vm1964 = vcmask 523264
    %v1966 = vsel %vm1964, %v1936, 0
    %v1969 = vsel %vm1964, %v1937, 0
    %v1972 = vsel %vm1964, %v1938, 0
    %v1975 = vsel %vm1964, %v1939, 0
    %1977 = vmatpush.msra.mxu0 0.0
    %1978 = vmatpush.msra.mxu0 0.0
    %1979 = vmatpush.msra.mxu0 0.0
    %1980 = vmatpush.msra.mxu0 0.0
    %1981 = vmatpush.msra.mxu0 0.0
    %1982 = vmatpush.msra.mxu0 0.0
    %1983 = vmatpush.msra.mxu0 0.0
    %1984 = vmatpush.msra.mxu0 0.0
    %1985 = vmatpush.msra.mxu0 %v1955
    %1986 = vmatpush.msra.mxu0 %v1954
    %1987 = vmatpush.msra.mxu0 %v1953
    %1988 = vmatpush.msra.mxu0 %v1952
    %1989 = vmatpush.msra.mxu0 %v1951
    %1990 = vmatpush.msra.mxu0 %v1950
    %1991 = vmatpush.msra.mxu0 %v1949
    %1992 = vmatpush.msra.mxu0 %v1948
    %1993 = vmatmul.f32.gmra.mxu0 %v1966
    %v1994 = vpop.f32.mrf.mxu0
    %v1995 = vadd.f32 0.0, %v1994
    %1996 = vmatmul.f32.gmra.mxu0 %v1969
    %v1997 = vpop.f32.mrf.mxu0
    %v1998 = vadd.f32 0.0, %v1997
    %1999 = vmatmul.f32.gmra.mxu0 %v1972
    %v2000 = vpop.f32.mrf.mxu0
    %v2001 = vadd.f32 0.0, %v2000
    %2002 = vmatmul.f32.gmra.mxu0 %v1975
    %v2003 = vpop.f32.mrf.mxu0
    %v2004 = vadd.f32 0.0, %v2003
    %2005 = vdwg.mxu0
    %v2007 = vsel %vm1964, %v1944, 0
    %v2010 = vsel %vm1964, %v1945, 0
    %v2013 = vsel %vm1964, %v1946, 0
    %v2016 = vsel %vm1964, %v1947, 0
    %2018 = vmatpush.msra.mxu0 0.0
    %2019 = vmatpush.msra.mxu0 0.0
    %2020 = vmatpush.msra.mxu0 0.0
    %2021 = vmatpush.msra.mxu0 0.0
    %2022 = vmatpush.msra.mxu0 0.0
    %2023 = vmatpush.msra.mxu0 0.0
    %2024 = vmatpush.msra.mxu0 0.0
    %2025 = vmatpush.msra.mxu0 0.0
    %2026 = vmatpush.msra.mxu0 %v1963
    %2027 = vmatpush.msra.mxu0 %v1962
    %2028 = vmatpush.msra.mxu0 %v1961
    %2029 = vmatpush.msra.mxu0 %v1960
    %2030 = vmatpush.msra.mxu0 %v1959
    %2031 = vmatpush.msra.mxu0 %v1958
    %2032 = vmatpush.msra.mxu0 %v1957
    %2033 = vmatpush.msra.mxu0 %v1956
    %2034 = vmatmul.f32.gmra.mxu0 %v2007
    %v2035 = vpop.f32.mrf.mxu0
    %v2036 = vadd.f32 0.0, %v2035
    %2037 = vmatmul.f32.gmra.mxu0 %v2010
    %v2038 = vpop.f32.mrf.mxu0
    %v2039 = vadd.f32 0.0, %v2038
    %2040 = vmatmul.f32.gmra.mxu0 %v2013
    %v2041 = vpop.f32.mrf.mxu0
    %v2042 = vadd.f32 0.0, %v2041
    %2043 = vmatmul.f32.gmra.mxu0 %v2016
    %v2044 = vpop.f32.mrf.mxu0
    %v2045 = vadd.f32 0.0, %v2044
    %2046 = vdwg.mxu0
    %v2047 = vadd.f32 %v1936, %v1944
    %v2048 = vadd.f32 %v1937, %v1945
    %v2049 = vadd.f32 %v1938, %v1946
    %v2050 = vadd.f32 %v1939, %v1947
    %v2051 = vadd.f32 %v1948, %v1956
    %v2052 = vadd.f32 %v1949, %v1957
    %v2053 = vadd.f32 %v1950, %v1958
    %v2054 = vadd.f32 %v1951, %v1959
    %v2055 = vadd.f32 %v1952, %v1960
    %v2056 = vadd.f32 %v1953, %v1961
    %v2057 = vadd.f32 %v1954, %v1962
    %v2058 = vadd.f32 %v1955, %v1963
    %v2060 = vsel %vm1964, %v2047, 0
    %v2063 = vsel %vm1964, %v2048, 0
    %v2066 = vsel %vm1964, %v2049, 0
    %v2069 = vsel %vm1964, %v2050, 0
    %2071 = vmatpush.msra.mxu0 0.0
    %2072 = vmatpush.msra.mxu0 0.0
    %2073 = vmatpush.msra.mxu0 0.0
    %2074 = vmatpush.msra.mxu0 0.0
    %2075 = vmatpush.msra.mxu0 0.0
    %2076 = vmatpush.msra.mxu0 0.0
    %2077 = vmatpush.msra.mxu0 0.0
    %2078 = vmatpush.msra.mxu0 0.0
    %2079 = vmatpush.msra.mxu0 %v2058
    %2080 = vmatpush.msra.mxu0 %v2057
    %2081 = vmatpush.msra.mxu0 %v2056
    %2082 = vmatpush.msra.mxu0 %v2055
    %2083 = vmatpush.msra.mxu0 %v2054
    %2084 = vmatpush.msra.mxu0 %v2053
    %2085 = vmatpush.msra.mxu0 %v2052
    %2086 = vmatpush.msra.mxu0 %v2051
    %2087 = vmatmul.f32.gmra.mxu0 %v2060
    %v2088 = vpop.f32.mrf.mxu0
    %v2089 = vadd.f32 0.0, %v2088
    %2090 = vmatmul.f32.gmra.mxu0 %v2063
    %v2091 = vpop.f32.mrf.mxu0
    %v2092 = vadd.f32 0.0, %v2091
    %2093 = vmatmul.f32.gmra.mxu0 %v2066
    %v2094 = vpop.f32.mrf.mxu0
    %v2095 = vadd.f32 0.0, %v2094
    %2096 = vmatmul.f32.gmra.mxu0 %v2069
    %v2097 = vpop.f32.mrf.mxu0
    %v2098 = vadd.f32 0.0, %v2097
    %2099 = vdwg.mxu0
    %v2100 = vsub.f32 %v1995, %v2036
    %v2101 = vsub.f32 %v1998, %v2039
    %v2102 = vsub.f32 %v2001, %v2042
    %v2103 = vsub.f32 %v2004, %v2045
    %v2104 = vsub.f32 %v2089, %v1995
    %v2105 = vsub.f32 %v2092, %v1998
    %v2106 = vsub.f32 %v2095, %v2001
    %v2107 = vsub.f32 %v2098, %v2004
    %v2108 = vsub.f32 %v2104, %v2036
    %v2109 = vsub.f32 %v2105, %v2039
    %v2110 = vsub.f32 %v2106, %v2042
    %v2111 = vsub.f32 %v2107, %v2045
    %v2112 = vmul.f32 %v2100, %v1782
    %v2113 = vmul.f32 %v2101, %v1783
    %v2114 = vmul.f32 %v2102, %v1784
    %v2115 = vmul.f32 %v2103, %v1785
    %v2116 = vmul.f32 %v2108, %v1790
    %v2117 = vmul.f32 %v2109, %v1791
    %v2118 = vmul.f32 %v2110, %v1792
    %v2119 = vmul.f32 %v2111, %v1793
    %v2120 = vsub.f32 %v2112, %v2116
    %v2121 = vsub.f32 %v2113, %v2117
    %v2122 = vsub.f32 %v2114, %v2118
    %v2123 = vsub.f32 %v2115, %v2119
    %v2124 = vmul.f32 %v2100, %v1790
    %v2125 = vmul.f32 %v2101, %v1791
    %v2126 = vmul.f32 %v2102, %v1792
    %v2127 = vmul.f32 %v2103, %v1793
    %v2128 = vmul.f32 %v2108, %v1782
    %v2129 = vmul.f32 %v2109, %v1783
    %v2130 = vmul.f32 %v2110, %v1784
    %v2131 = vmul.f32 %v2111, %v1785
    %v2132 = vadd.f32 %v2124, %v2128
    %v2133 = vadd.f32 %v2125, %v2129
    %v2134 = vadd.f32 %v2126, %v2130
    %v2135 = vadd.f32 %v2127, %v2131
    %v2136 = vld [vmem:[#allocation14] sm:$0xff]
    %v2137 = vld [vmem:[#allocation14 + $0x8] sm:$0xff]
    %v2138 = vld [vmem:[#allocation16] sm:$0xff]
    %v2139 = vld [vmem:[#allocation16 + $0x8] sm:$0xff]
    %v2141 = vsel %vm1499, %v2136, 0
    %v2144 = vsel %vm1499, %v2137, 0
    %2146 = vmatpush.msra.mxu0 0.0
    %2147 = vmatpush.msra.mxu0 0.0
    %2148 = vmatpush.msra.mxu0 0.0
    %2149 = vmatpush.msra.mxu0 0.0
    %2150 = vmatpush.msra.mxu0 0.0
    %2151 = vmatpush.msra.mxu0 0.0
    %2152 = vmatpush.msra.mxu0 0.0
    %2153 = vmatpush.msra.mxu0 0.0
    %2154 = vmatpush.msra.mxu0 0.0
    %2155 = vmatpush.msra.mxu0 0.0
    %2156 = vmatpush.msra.mxu0 0.0
    %2157 = vmatpush.msra.mxu0 0.0
    %2158 = vmatpush.msra.mxu0 %v2123
    %2159 = vmatpush.msra.mxu0 %v2122
    %2160 = vmatpush.msra.mxu0 %v2121
    %2161 = vmatpush.msra.mxu0 %v2120
    %2162 = vmatmul.f32.gmra.mxu0 %v2141
    %v2163 = vpop.f32.mrf.mxu0
    %v2164 = vadd.f32 0.0, %v2163
    %2165 = vmatmul.f32.gmra.mxu0 %v2144
    %v2166 = vpop.f32.mrf.mxu0
    %v2167 = vadd.f32 0.0, %v2166
    %2168 = vdwg.mxu0
    %v2170 = vsel %vm1499, %v2138, 0
    %v2173 = vsel %vm1499, %v2139, 0
    %2175 = vmatpush.msra.mxu0 0.0
    %2176 = vmatpush.msra.mxu0 0.0
    %2177 = vmatpush.msra.mxu0 0.0
    %2178 = vmatpush.msra.mxu0 0.0
    %2179 = vmatpush.msra.mxu0 0.0
    %2180 = vmatpush.msra.mxu0 0.0
    %2181 = vmatpush.msra.mxu0 0.0
    %2182 = vmatpush.msra.mxu0 0.0
    %2183 = vmatpush.msra.mxu0 0.0
    %2184 = vmatpush.msra.mxu0 0.0
    %2185 = vmatpush.msra.mxu0 0.0
    %2186 = vmatpush.msra.mxu0 0.0
    %2187 = vmatpush.msra.mxu0 %v2135
    %2188 = vmatpush.msra.mxu0 %v2134
    %2189 = vmatpush.msra.mxu0 %v2133
    %2190 = vmatpush.msra.mxu0 %v2132
    %2191 = vmatmul.f32.gmra.mxu0 %v2170
    %v2192 = vpop.f32.mrf.mxu0
    %v2193 = vadd.f32 0.0, %v2192
    %2194 = vmatmul.f32.gmra.mxu0 %v2173
    %v2195 = vpop.f32.mrf.mxu0
    %v2196 = vadd.f32 0.0, %v2195
    %2197 = vdwg.mxu0
    %v2198 = vadd.f32 %v2136, %v2138
    %v2199 = vadd.f32 %v2137, %v2139
    %v2200 = vadd.f32 %v2120, %v2132
    %v2201 = vadd.f32 %v2121, %v2133
    %v2202 = vadd.f32 %v2122, %v2134
    %v2203 = vadd.f32 %v2123, %v2135
    %v2205 = vsel %vm1499, %v2198, 0
    %v2208 = vsel %vm1499, %v2199, 0
    %2210 = vmatpush.msra.mxu0 0.0
    %2211 = vmatpush.msra.mxu0 0.0
    %2212 = vmatpush.msra.mxu0 0.0
    %2213 = vmatpush.msra.mxu0 0.0
    %2214 = vmatpush.msra.mxu0 0.0
    %2215 = vmatpush.msra.mxu0 0.0
    %2216 = vmatpush.msra.mxu0 0.0
    %2217 = vmatpush.msra.mxu0 0.0
    %2218 = vmatpush.msra.mxu0 0.0
    %2219 = vmatpush.msra.mxu0 0.0
    %2220 = vmatpush.msra.mxu0 0.0
    %2221 = vmatpush.msra.mxu0 0.0
    %2222 = vmatpush.msra.mxu0 %v2203
    %2223 = vmatpush.msra.mxu0 %v2202
    %2224 = vmatpush.msra.mxu0 %v2201
    %2225 = vmatpush.msra.mxu0 %v2200
    %2226 = vmatmul.f32.gmra.mxu0 %v2205
    %v2227 = vpop.f32.mrf.mxu0
    %v2228 = vadd.f32 0.0, %v2227
    %2229 = vmatmul.f32.gmra.mxu0 %v2208
    %v2230 = vpop.f32.mrf.mxu0
    %v2231 = vadd.f32 0.0, %v2230
    %2232 = vdwg.mxu0
    %v2233 = vsub.f32 %v2164, %v2193
    %v2234 = vsub.f32 %v2167, %v2196
    %v2235 = vsub.f32 %v2228, %v2164
    %v2236 = vsub.f32 %v2231, %v2167
    %v2237 = vsub.f32 %v2235, %v2193
    %v2238 = vsub.f32 %v2236, %v2196
    %v2239 = vld [vmem:[%s16] sm:$0xff]
    %v2240 = vld [vmem:[%s16 + $0x8] sm:$0xff]
    %v2241 = vld [vmem:[%s16 + $0x10] sm:$0xff]
    %v2242 = vld [vmem:[%s16 + $0x18] sm:$0xff]
    %v2243 = vld [vmem:[%s16 + $0x20] sm:$0xff]
    %v2244 = vld [vmem:[%s16 + $0x28] sm:$0xff]
    %v2245 = vld [vmem:[%s16 + $0x30] sm:$0xff]
    %v2246 = vld [vmem:[%s16 + $0x38] sm:$0xff]
    %v2247 = vld [vmem:[%s16 + $0x40] sm:$0xff]
    %v2248 = vld [vmem:[%s16 + $0x48] sm:$0xff]
    %v2249 = vld [vmem:[%s16 + $0x50] sm:$0xff]
    %v2250 = vld [vmem:[%s16 + $0x58] sm:$0xff]
    %v2251 = vld [vmem:[%s16 + $0x60] sm:$0xff]
    %v2252 = vld [vmem:[%s16 + $0x68] sm:$0xff]
    %v2253 = vld [vmem:[%s16 + $0x70] sm:$0xff]
    %v2254 = vld [vmem:[%s16 + $0x78] sm:$0xff]
    %v2255 = vld [vmem:[%s17] sm:$0xff]
    %v2256 = vld [vmem:[%s17 + $0x8] sm:$0xff]
    %v2257 = vld [vmem:[%s17 + $0x10] sm:$0xff]
    %v2258 = vld [vmem:[%s17 + $0x18] sm:$0xff]
    %v2259 = vld [vmem:[%s17 + $0x20] sm:$0xff]
    %v2260 = vld [vmem:[%s17 + $0x28] sm:$0xff]
    %v2261 = vld [vmem:[%s17 + $0x30] sm:$0xff]
    %v2262 = vld [vmem:[%s17 + $0x38] sm:$0xff]
    %v2263 = vld [vmem:[%s17 + $0x40] sm:$0xff]
    %v2264 = vld [vmem:[%s17 + $0x48] sm:$0xff]
    %v2265 = vld [vmem:[%s17 + $0x50] sm:$0xff]
    %v2266 = vld [vmem:[%s17 + $0x58] sm:$0xff]
    %v2267 = vld [vmem:[%s17 + $0x60] sm:$0xff]
    %v2268 = vld [vmem:[%s17 + $0x68] sm:$0xff]
    %v2269 = vld [vmem:[%s17 + $0x70] sm:$0xff]
    %v2270 = vld [vmem:[%s17 + $0x78] sm:$0xff]
    %2271 = vmatpush.msra.mxu0 %v2254
    %2272 = vmatpush.msra.mxu0 %v2253
    %2273 = vmatpush.msra.mxu0 %v2252
    %2274 = vmatpush.msra.mxu0 %v2251
    %2275 = vmatpush.msra.mxu0 %v2250
    %2276 = vmatpush.msra.mxu0 %v2249
    %2277 = vmatpush.msra.mxu0 %v2248
    %2278 = vmatpush.msra.mxu0 %v2247
    %2279 = vmatpush.msra.mxu0 %v2246
    %2280 = vmatpush.msra.mxu0 %v2245
    %2281 = vmatpush.msra.mxu0 %v2244
    %2282 = vmatpush.msra.mxu0 %v2243
    %2283 = vmatpush.msra.mxu0 %v2242
    %2284 = vmatpush.msra.mxu0 %v2241
    %2285 = vmatpush.msra.mxu0 %v2240
    %2286 = vmatpush.msra.mxu0 %v2239
    %2287 = vmatmul.f32.gmra.mxu0 %v2233
    %v2288 = vpop.f32.mrf.mxu0
    %v2289 = vadd.f32 0.0, %v2288
    %2290 = vmatmul.f32.gmra.mxu0 %v2234
    %v2291 = vpop.f32.mrf.mxu0
    %v2292 = vadd.f32 0.0, %v2291
    %2293 = vdwg.mxu0
    %2294 = vmatpush.msra.mxu0 %v2270
    %2295 = vmatpush.msra.mxu0 %v2269
    %2296 = vmatpush.msra.mxu0 %v2268
    %2297 = vmatpush.msra.mxu0 %v2267
    %2298 = vmatpush.msra.mxu0 %v2266
    %2299 = vmatpush.msra.mxu0 %v2265
    %2300 = vmatpush.msra.mxu0 %v2264
    %2301 = vmatpush.msra.mxu0 %v2263
    %2302 = vmatpush.msra.mxu0 %v2262
    %2303 = vmatpush.msra.mxu0 %v2261
    %2304 = vmatpush.msra.mxu0 %v2260
    %2305 = vmatpush.msra.mxu0 %v2259
    %2306 = vmatpush.msra.mxu0 %v2258
    %2307 = vmatpush.msra.mxu0 %v2257
    %2308 = vmatpush.msra.mxu0 %v2256
    %2309 = vmatpush.msra.mxu0 %v2255
    %2310 = vmatmul.f32.gmra.mxu0 %v2237
    %v2311 = vpop.f32.mrf.mxu0
    %v2312 = vadd.f32 0.0, %v2311
    %2313 = vmatmul.f32.gmra.mxu0 %v2238
    %v2314 = vpop.f32.mrf.mxu0
    %v2315 = vadd.f32 0.0, %v2314
    %2316 = vdwg.mxu0
    %v2317 = vadd.f32 %v2233, %v2237
    %v2318 = vadd.f32 %v2234, %v2238
    %v2319 = vadd.f32 %v2239, %v2255
    %v2320 = vadd.f32 %v2240, %v2256
    %v2321 = vadd.f32 %v2241, %v2257
    %v2322 = vadd.f32 %v2242, %v2258
    %v2323 = vadd.f32 %v2243, %v2259
    %v2324 = vadd.f32 %v2244, %v2260
    %v2325 = vadd.f32 %v2245, %v2261
    %v2326 = vadd.f32 %v2246, %v2262
    %v2327 = vadd.f32 %v2247, %v2263
    %v2328 = vadd.f32 %v2248, %v2264
    %v2329 = vadd.f32 %v2249, %v2265
    %v2330 = vadd.f32 %v2250, %v2266
    %v2331 = vadd.f32 %v2251, %v2267
    %v2332 = vadd.f32 %v2252, %v2268
    %v2333 = vadd.f32 %v2253, %v2269
    %v2334 = vadd.f32 %v2254, %v2270
    %2335 = vmatpush.msra.mxu0 %v2334
    %2336 = vmatpush.msra.mxu0 %v2333
    %2337 = vmatpush.msra.mxu0 %v2332
    %2338 = vmatpush.msra.mxu0 %v2331
    %2339 = vmatpush.msra.mxu0 %v2330
    %2340 = vmatpush.msra.mxu0 %v2329
    %2341 = vmatpush.msra.mxu0 %v2328
    %2342 = vmatpush.msra.mxu0 %v2327
    %2343 = vmatpush.msra.mxu0 %v2326
    %2344 = vmatpush.msra.mxu0 %v2325
    %2345 = vmatpush.msra.mxu0 %v2324
    %2346 = vmatpush.msra.mxu0 %v2323
    %2347 = vmatpush.msra.mxu0 %v2322
    %2348 = vmatpush.msra.mxu0 %v2321
    %2349 = vmatpush.msra.mxu0 %v2320
    %2350 = vmatpush.msra.mxu0 %v2319
    %2351 = vmatmul.f32.gmra.mxu0 %v2317
    %v2352 = vpop.f32.mrf.mxu0
    %v2353 = vadd.f32 0.0, %v2352
    %2354 = vmatmul.f32.gmra.mxu0 %v2318
    %v2355 = vpop.f32.mrf.mxu0
    %v2356 = vadd.f32 0.0, %v2355
    %2357 = vdwg.mxu0
    %v2358 = vsub.f32 %v2289, %v2312
    %v2359 = vsub.f32 %v2292, %v2315
    %v2360 = vsub.f32 %v2353, %v2289
    %v2361 = vsub.f32 %v2356, %v2292
    %v2362 = vsub.f32 %v2360, %v2312
    %v2363 = vsub.f32 %v2361, %v2315
    %2364 = vst.msk [vmem:[#allocation17] sm:$0xff] %vm1964, %v2358
    %2365 = vst.msk [vmem:[#allocation17 + $0x8] sm:$0xff] %vm1964, %v2359
    %2366 = vst.msk [vmem:[#allocation18] sm:$0xff] %vm1964, %v2362
    %2367 = vst.msk [vmem:[#allocation18 + $0x8] sm:$0xff] %vm1964, %v2363
    // Predicated region
    $region110: #{tpu_custom_call.1} parent=1 // pred_check
      _
    $region111: #{tpu_custom_call.1} parent=1 // pred_check_branch
      %2369 = sbr.rel (0) target = $region113
    $region112: #{tpu_custom_call.1} parent=1 // pred_region
      %2371 = vsyncadd [#allocation4], 0
      %s2372 = sshll.u32 [#allocation17], 4
      %s2373 = int_to_ptr.vmem [resolvable:$true] %s2372
      %s2374 = sshll.u32 %s18, 4
      %s2375 = int_to_ptr.hbm [resolvable:$true] %s2374
      %2380 = dma.vmem_to_hbm [thread:$0]  %s2373, 256, %s2375, [#allocation4], 128, 128, 8
    $region113: #{tpu_custom_call.1} parent=1 // pred_fallthru
      _
    // Predicated region
    $region114: #{tpu_custom_call.1} parent=1 // pred_check
      _
    $region115: #{tpu_custom_call.1} parent=1 // pred_check_branch
      %2382 = sbr.rel (0) target = $region117
    $region116: #{tpu_custom_call.1} parent=1 // pred_region
      %2384 = vsyncadd [#allocation19], 0
      %s2385 = sshll.u32 [#allocation18], 4
      %s2386 = int_to_ptr.vmem [resolvable:$true] %s2385
      %s2387 = sshll.u32 %s19, 4
      %s2388 = int_to_ptr.hbm [resolvable:$true] %s2387
      %2393 = dma.vmem_to_hbm [thread:$0]  %s2386, 256, %s2388, [#allocation19], 128, 128, 8
    $region117: #{tpu_custom_call.1} parent=1 // pred_fallthru
      _
    // Predicated region
    $region118: #{tpu_custom_call.1} parent=1 // pred_check
      _
    $region119: #{tpu_custom_call.1} parent=1 // pred_check_branch
      %2395 = sbr.rel (0) target = $region121
    $region120: #{tpu_custom_call.1} parent=1 // pred_region
      %2397 = dma.done [#allocation4], 256
    $region121: #{tpu_custom_call.1} parent=1 // pred_fallthru
      _
    // Predicated region
    $region122: #{tpu_custom_call.1} parent=1 // pred_check
      _
    $region123: #{tpu_custom_call.1} parent=1 // pred_check_branch
      %2399 = sbr.rel (0) target = $region125
    $region124: #{tpu_custom_call.1} parent=1 // pred_region
      %2401 = dma.done [#allocation19], 256
    $region125: #{tpu_custom_call.1} parent=1 // pred_fallthru
      _
    %2402 = vsyncpa [#allocation3], 1
    %2403 = vsyncpa [#allocation6], 1
    %2404 = vsyncpa [#allocation9], 1
    %2405 = vsyncpa [#allocation12], 1
    %2406 = vsyncpa [#allocation15], 1
    %2407 = vsyncpa [#allocation4], 1
    %2408 = vsyncpa [#allocation19], 1

</llo_original>
